<compile_context>
chip_gen: v5e
topology: v5e:2x2
jax: 0.10.0
libtpu: 0.0.40
codegen_flags: <defaults>
</compile_context>

<pallas_src>
import jax
import jax.numpy as jnp
from jax import lax
from jax.experimental import pallas as pl
from jax.experimental.pallas import tpu as pltpu

LANE = 128
SUBLANE = 8
_MIB = 1 << 20


# --------------------------- small helpers ---------------------------

def _round_up(x, m):
    return (x + m - 1) // m * m


def _pick_tile(n, candidates):
    for t in candidates:
        if n % t == 0:
            return t
    return n


def _pad2(x, rows, cols, dtype):
    r, c = x.shape
    return jnp.pad(x, ((0, rows - r), (0, cols - c))).astype(dtype)


# --------------------------- Pallas kernels ---------------------------

def _make_aggr1_encoder1_kernel(feats_resident, tk, deg_col, ones_col):
    """Tiled mean aggregation over adjacency columns fused with encoder-1."""

    def kernel(adj_ref, feat_ref, self_ref, ws_ref, wn_ref, b_ref,
               out_ref, acc_ref):
        k = pl.program_id(1)

        @pl.when(k == 0)
        def _init():
            acc_ref[...] = jnp.zeros_like(acc_ref)

        if feats_resident:
            start = pl.multiple_of(k * tk, tk)
            feat_k = feat_ref[pl.ds(start, tk), :]        # slice of resident feats
        else:
            feat_k = feat_ref[...]                        # streamed (tk, f_pad) block

        # Degree folded into the MXU: column `deg_col` of the feature matrix is
        # all-ones, so that column of the accumulator is the row degree.  The
        # hot loop is a single bf16 matmul push -- no VALU cast / XLU reduce.
        acc_ref[...] += jnp.dot(adj_ref[...], feat_k,
                                preferred_element_type=jnp.float32)

        @pl.when(k == pl.num_programs(1) - 1)
        def _finalize():
            acc = acc_ref[...]
            deg = acc[:, deg_col:deg_col + 1]
            inv_deg = pl.reciprocal(jnp.maximum(deg, 1.0), approx=True)
            neigh = (acc * inv_deg).astype(jnp.bfloat16)
            # Linear(cat([self, neigh], 1)) == self @ Ws + neigh @ Wn + b.
            # The extra ones column in self/neigh hits zero-padded weight rows.
            h = (jnp.dot(self_ref[...], ws_ref[...],
                         preferred_element_type=jnp.float32)
                 + jnp.dot(neigh, wn_ref[...],
                           preferred_element_type=jnp.float32)
                 + b_ref[...])
            h = jnp.maximum(h, 0.0)                                   # ReLU
            inv_nrm = lax.rsqrt(
                jnp.maximum(jnp.sum(h * h, axis=1, keepdims=True), 1e-24))
            x = h * inv_nrm                                           # F.normalize
            # Plant an all-ones column so stage 2 reads degrees off its matmul.
            cols = lax.broadcasted_iota(jnp.int32, x.shape, 1)
            x = jnp.where(cols == ones_col, 1.0, x)
            out_ref[...] = x.astype(out_ref.dtype)

    return kernel


def _make_gather_encoder2_head_kernel(qm, nt, nt_pad, deg_col):
    """In-kernel row gather + mean aggregation-2 + encoder-2 + MLP head."""
    pad_cols = nt_pad - nt

    def kernel(nodes_smem,                                   # scalar prefetch (SMEM)
               nodes_ref, adj_hbm, en1_ref, ws_ref, wn_ref, b_ref,
               wl1_ref, bl1_ref, wl2_ref, bl2_ref,
               out_ref, adj_rows, sem):
        q = pl.program_id(0)

        # Padded columns of the gather scratch must be zero (garbage there
        # could be NaN and would poison the aggregation matmul).
        if pad_cols:
            adj_rows[:, pl.ds(nt, pad_cols)] = jnp.zeros((qm, pad_cols),
                                                         jnp.float32)

        def _row_copy(r):
            node = nodes_smem[q * qm + r]
            if nt == nt_pad:
                dst = adj_rows.at[r]
            else:
                dst = adj_rows.at[r, pl.ds(0, nt)]
            return pltpu.make_async_copy(adj_hbm.at[node], dst, sem.at[r])

        # Kick off the per-node adjacency-row gather DMAs (from the original
        # unpadded f32 adjacency in HBM) ...
        @pl.loop(0, qm)
        def _start(r):
            _row_copy(r).start()

        # ... and hide their latency behind the self-row gather, done as a
        # one-hot matmul on the MXU (no dynamic sublane gathers on packed bf16).
        node_col = nodes_ref[...]                            # (qm, 1) int32
        cols = lax.broadcasted_iota(jnp.int32, (qm, nt_pad), 1)
        onehot = (cols == node_col).astype(jnp.bfloat16)
        self_rows = jnp.dot(onehot, en1_ref[...],
                            preferred_element_type=jnp.float32)   # == en1[nodes]

        @pl.loop(0, qm)
        def _wait(r):
            _row_copy(r).wait()

        a = adj_rows[...].astype(jnp.bfloat16)               # 0/1 exact in bf16
        num = jnp.dot(a, en1_ref[...], preferred_element_type=jnp.float32)
        deg = num[:, deg_col:deg_col + 1]                    # ones column of en1
        neigh = (num * pl.reciprocal(jnp.maximum(deg, 1.0), approx=True)
                 ).astype(jnp.bfloat16)

        h = (jnp.dot(self_rows.astype(jnp.bfloat16), ws_ref[...],
                     preferred_element_type=jnp.float32)
             + jnp.dot(neigh, wn_ref[...], preferred_element_type=jnp.float32)
             + b_ref[...])
        h = jnp.maximum(h, 0.0)
        inv_nrm = lax.rsqrt(
            jnp.maximum(jnp.sum(h * h, axis=1, keepdims=True), 1e-24))
        x = (h * inv_nrm).astype(jnp.bfloat16)               # encoder-2 output

        h1 = (jnp.dot(x, wl1_ref[...], preferred_element_type=jnp.float32)
              + bl1_ref[...])
        logits = (jnp.dot(h1.astype(jnp.bfloat16), wl2_ref[...],
                          preferred_element_type=jnp.float32) + bl2_ref[...])
        m = jnp.max(logits, axis=1, keepdims=True)           # padded classes at -1e30
        e = jnp.exp(logits - m)
        out_ref[...] = e / jnp.sum(e, axis=1, keepdims=True)

    return kernel


# --------------------------- parameter prep (hoisted) ---------------------------

def prepare_params(params, in_dim, embed_dim, linear_dim, num_class):
    """Pre-transpose + zero-pad all weights to lane-dense shapes once.

    Big matmul operands are stored bf16 (native MXU rate, half the HBM/VMEM
    bytes); biases stay f32 and are added to the f32 accumulators.  f_pad /
    e_pad are rounded up from dim+1 so the degree "ones column" always fits.
    """
    f_pad = _round_up(in_dim + 1, LANE)
    e_pad = _round_up(embed_dim + 1, LANE)
    l_pad = _round_up(linear_dim, LANE)
    c_pad = _round_up(num_class, LANE)

    w1, b1 = params["en1_w"], params["en1_b"]                # (E, 2F), (E,)
    w2, b2 = params["en2_w"], params["en2_b"]                # (E, 2E), (E,)
    wl1, bl1 = params["l1_w"], params["l1_b"]                # (L, E), (L,)
    wl2, bl2 = params["l2_w"], params["l2_b"]                # (C, L), (C,)

    # Padded class columns get a huge negative bias so softmax ignores them.
    bl2_pad = jnp.full((1, c_pad), -1e30, jnp.float32)
    bl2_pad = bl2_pad.at[0, :num_class].set(bl2.astype(jnp.float32))

    return {
        "ws1": _pad2(w1[:, :in_dim].T, f_pad, e_pad, jnp.bfloat16),
        "wn1": _pad2(w1[:, in_dim:].T, f_pad, e_pad, jnp.bfloat16),
        "b1": _pad2(b1.reshape(1, -1), 1, e_pad, jnp.float32),
        "ws2": _pad2(w2[:, :embed_dim].T, e_pad, e_pad, jnp.bfloat16),
        "wn2": _pad2(w2[:, embed_dim:].T, e_pad, e_pad, jnp.bfloat16),
        "b2": _pad2(b2.reshape(1, -1), 1, e_pad, jnp.float32),
        "wl1": _pad2(wl1.T, e_pad, l_pad, jnp.bfloat16),
        "bl1": _pad2(bl1.reshape(1, -1), 1, l_pad, jnp.float32),
        "wl2": _pad2(wl2.T, l_pad, c_pad, jnp.bfloat16),
        "bl2": bl2_pad,
        "in_dim": in_dim,
        "embed_dim": embed_dim,
        "num_class": num_class,
    }


# --------------------------- GAP forward ---------------------------

def gap_forward(nodes, adj, data, kp):
    nt = adj.shape[0]
    in_dim = kp["in_dim"]
    embed_dim = kp["embed_dim"]
    f_pad, e_pad = kp["ws1"].shape
    l_pad = kp["wl1"].shape[1]
    c_pad = kp["wl2"].shape[1]

    nt_pad = _round_up(nt, LANE)
    tm = _pick_tile(nt_pad, (512, 256, 128))          # row tile (megacore "parallel")
    tk = _pick_tile(nt_pad, (2048, 1024, 512, 256, 128))  # adjacency-column tile

    # Single padded bf16 adjacency for the dominant stage-1 stream (0/1 exact
    # in bf16 -> half the HBM bytes).  Stage 2 gathers its few query rows
    # straight from the caller's unpadded f32 adjacency -- no padded f32 copy.
    adj_bf = jnp.pad(adj.astype(jnp.bfloat16),
                     ((0, nt_pad - nt), (0, nt_pad - nt)))
    adj_f32 = adj.astype(jnp.float32)                 # no-op if already f32

    # Features, padded bf16, with an all-ones column at `in_dim` so the degree
    # falls out of the aggregation matmul (the extra column only ever hits
    # zero-padded weight rows).  The same array is used for the self stream.
    feats = jnp.zeros((nt_pad, f_pad), jnp.bfloat16)
    feats = feats.at[:nt, :in_dim].set(data.astype(jnp.bfloat16))
    feats = feats.at[:, in_dim].set(1.0)

    # Keep the feature matrix fully VMEM-resident when it is small enough
    # (constant-index full-extent block -> fetched once, never re-streamed).
    feats_resident = nt_pad * f_pad <= 2 * 1024 * 1024
    if feats_resident:
        feat_spec = pl.BlockSpec((nt_pad, f_pad), lambda i, k: (0, 0))
    else:
        feat_spec = pl.BlockSpec((tk, f_pad), lambda i, k: (k, 0))

    s1_vmem = (2 * tm * tk * 2
               + (2 * nt_pad * f_pad * 2 if feats_resident else 2 * tk * f_pad * 2)
               + 2 * tm * f_pad * 2
               + 4 * f_pad * e_pad * 2
               + 2 * tm * e_pad * 2
               + tm * f_pad * 4)
    s1_limit = int(min(64 * _MIB, max(2 * s1_vmem, 32 * _MIB)))

    # ---- stage 1: mean aggregation over all nodes fused with encoder-1 ----
    en1_all = pl.pallas_call(
        _make_aggr1_encoder1_kernel(feats_resident, tk, in_dim, embed_dim),
        out_shape=jax.ShapeDtypeStruct((nt_pad, e_pad), jnp.bfloat16),
        grid_spec=pltpu.PrefetchScalarGridSpec(
            num_scalar_prefetch=0,
            grid=(nt_pad // tm, nt_pad // tk),
            in_specs=[
                pl.BlockSpec((tm, tk), lambda i, k: (i, k)),          # adj tile (bf16)
                feat_spec,                                            # feats (+ones col)
                pl.BlockSpec((tm, f_pad), lambda i, k: (i, 0)),       # self feats (bf16)
                pl.BlockSpec((f_pad, e_pad), lambda i, k: (0, 0)),    # W_self (resident)
                pl.BlockSpec((f_pad, e_pad), lambda i, k: (0, 0)),    # W_neigh (resident)
                pl.BlockSpec((1, e_pad), lambda i, k: (0, 0)),        # bias (f32)
            ],
            out_specs=pl.BlockSpec((tm, e_pad), lambda i, k: (i, 0)),
            scratch_shapes=[pltpu.VMEM((tm, f_pad), jnp.float32)],    # f32 accumulator
        ),
        compiler_params=pltpu.CompilerParams(
            dimension_semantics=("parallel", "arbitrary"),
            vmem_limit_bytes=s1_limit),
    )(adj_bf, feats, feats, kp["ws1"], kp["wn1"], kp["b1"])

    # ---- stage 2: gather query rows + aggregation-2 + encoder-2 + head ----
    n = nodes.shape[0]
    n_pad = _round_up(n, SUBLANE)
    qm = _pick_tile(n_pad, (64, 32, 16, 8))
    while qm > SUBLANE and qm * nt_pad * 4 > 8 * _MIB:    # cap gather scratch
        qm //= 2
    nodes_i32 = jnp.pad(nodes.astype(jnp.int32), (0, n_pad - n))
    nodes_col = nodes_i32.reshape(n_pad, 1)

    s2_vmem = (2 * nt_pad * e_pad * 2                       # en1 (resident bf16)
               + qm * nt_pad * 4                            # gathered adj rows
               + qm * nt_pad * 8                            # onehot / iota temporaries
               + 2 * (2 * e_pad * e_pad + e_pad * l_pad + l_pad * c_pad) * 2
               + 2 * qm * c_pad * 4)
    s2_limit = int(min(64 * _MIB, max(2 * s2_vmem, 32 * _MIB)))

    # Note: en1 is kept VMEM-resident across the small query grid; padded query
    # rows silently compute node 0 and are sliced off.
    out_p = pl.pallas_call(
        _make_gather_encoder2_head_kernel(qm, nt, nt_pad, embed_dim),
        out_shape=jax.ShapeDtypeStruct((n_pad, c_pad), jnp.float32),
        grid_spec=pltpu.PrefetchScalarGridSpec(
            num_scalar_prefetch=1,
            grid=(n_pad // qm,),
            in_specs=[
                pl.BlockSpec((qm, 1), lambda q, nd: (q, 0)),           # node ids (VMEM)
                pl.BlockSpec(memory_space=pl.ANY),                     # adjacency (HBM)
                pl.BlockSpec((nt_pad, e_pad), lambda q, nd: (0, 0)),   # en1 (resident)
                pl.BlockSpec((e_pad, e_pad), lambda q, nd: (0, 0)),    # W_self 2
                pl.BlockSpec((e_pad, e_pad), lambda q, nd: (0, 0)),    # W_neigh 2
                pl.BlockSpec((1, e_pad), lambda q, nd: (0, 0)),        # bias 2
                pl.BlockSpec((e_pad, l_pad), lambda q, nd: (0, 0)),    # liner1 W
                pl.BlockSpec((1, l_pad), lambda q, nd: (0, 0)),        # liner1 b
                pl.BlockSpec((l_pad, c_pad), lambda q, nd: (0, 0)),    # liner2 W
                pl.BlockSpec((1, c_pad), lambda q, nd: (0, 0)),        # liner2 b (-1e30)
            ],
            out_specs=pl.BlockSpec((qm, c_pad), lambda q, nd: (q, 0)),
            scratch_shapes=[pltpu.VMEM((qm, nt_pad), jnp.float32),     # gathered rows
                            pltpu.SemaphoreType.DMA((qm,))],
        ),
        compiler_params=pltpu.CompilerParams(
            dimension_semantics=("parallel",),
            vmem_limit_bytes=s2_limit),
    )(nodes_i32, nodes_col, adj_f32, en1_all,
      kp["ws2"], kp["wn2"], kp["b2"],
      kp["wl1"], kp["bl1"], kp["wl2"], kp["bl2"])

    return out_p[:n, :kp["num_class"]]


# --------------------------- plain-JAX reference ---------------------------

def gap_reference(nodes, adj, data, params):
    deg = jnp.maximum(adj.sum(axis=1, keepdims=True), 1.0)
    aggr1 = (adj @ data) / deg
    h1 = jnp.concatenate([data, aggr1], axis=1) @ params["en1_w"].T + params["en1_b"]
    h1 = jnp.maximum(h1, 0.0)
    h1 = h1 / jnp.maximum(jnp.sqrt(jnp.sum(h1 * h1, axis=1, keepdims=True)), 1e-12)

    adj_n = adj[nodes]
    deg2 = jnp.maximum(adj_n.sum(axis=1, keepdims=True), 1.0)
    aggr2 = (adj_n @ h1) / deg2
    h2 = jnp.concatenate([h1[nodes], aggr2], axis=1) @ params["en2_w"].T + params["en2_b"]
    h2 = jnp.maximum(h2, 0.0)
    h2 = h2 / jnp.maximum(jnp.sqrt(jnp.sum(h2 * h2, axis=1, keepdims=True)), 1e-12)

    z = h2 @ params["l1_w"].T + params["l1_b"]
    z = z @ params["l2_w"].T + params["l2_b"]
    z = z - jnp.max(z, axis=1, keepdims=True)
    e = jnp.exp(z)
    return e / jnp.sum(e, axis=1, keepdims=True)


def xavier_normal(key, shape):
    fan_out, fan_in = shape
    std = jnp.sqrt(2.0 / (fan_in + fan_out))
    return std * jax.random.normal(key, shape, jnp.float32)


if __name__ == "__main__":
    # Small shapes consistent with the module; 384 nodes exercises multi-tile
    # accumulation in stage 1 and a multi-step query grid in stage 2.
    N_total = 384      # number of graph nodes
    F_dim = 16         # input feature dim
    embed_dim = 32     # GraphSAGE embedding dim (== output_feature_dim)
    linear_dim = 128   # GAP.liner1 width (default)
    num_class = 4
    num_query = 24

    key = jax.random.PRNGKey(0)
    k = jax.random.split(key, 9)

    data = jax.random.normal(k[0], (N_total, F_dim), jnp.float32)

    # Deterministic ring adjacency: every node has exactly 4 neighbors
    # (degree <= sample=10, so the reference's random subsampling never fires).
    idx = jnp.arange(N_total)
    adj = jnp.zeros((N_total, N_total), jnp.float32)
    for j in range(1, 5):
        adj = adj.at[idx, (idx + j) % N_total].set(1.0)

    nodes = ((jnp.arange(num_query, dtype=jnp.int32) * 13 + 5) % N_total)

    params = {
        "en1_w": xavier_normal(k[1], (embed_dim, 2 * F_dim)),
        "en1_b": 0.01 * jax.random.normal(k[2], (embed_dim,), jnp.float32),
        "en2_w": xavier_normal(k[3], (embed_dim, 2 * embed_dim)),
        "en2_b": 0.01 * jax.random.normal(k[4], (embed_dim,), jnp.float32),
        "l1_w": xavier_normal(k[5], (linear_dim, embed_dim)),
        "l1_b": 0.01 * jax.random.normal(k[6], (linear_dim,), jnp.float32),
        "l2_w": xavier_normal(k[7], (num_class, linear_dim)),
        "l2_b": 0.01 * jax.random.normal(k[8], (num_class,), jnp.float32),
    }

    kparams = prepare_params(params, F_dim, embed_dim, linear_dim, num_class)

    out = gap_forward(nodes, adj, data, kparams)
    out = jax.block_until_ready(out)

    ref = gap_reference(nodes, adj, data, params)

    assert out.shape == (num_query, num_class), out.shape
    assert jnp.allclose(jnp.sum(out, axis=1), 1.0, atol=1e-4), "softmax rows must sum to 1"
    assert jnp.allclose(out, ref, atol=2e-2), float(jnp.max(jnp.abs(out - ref)))
    print("KERNEL_OK")
</pallas_src>

<mosaic_0001>
module attributes {stable_mosaic.version = 11 : i64} {
  func.func @kernel(%arg0: i32, %arg1: i32, %arg2: memref<128x128xbf16, #tpu.memory_space<vmem>>, %arg3: memref<384x128xbf16, #tpu.memory_space<vmem>>, %arg4: memref<128x128xbf16, #tpu.memory_space<vmem>>, %arg5: memref<128x128xbf16, #tpu.memory_space<vmem>>, %arg6: memref<128x128xbf16, #tpu.memory_space<vmem>>, %arg7: memref<1x128xf32, #tpu.memory_space<vmem>>, %arg8: memref<128x128xbf16, #tpu.memory_space<vmem>>, %arg9: memref<128x128xf32, #tpu.memory_space<vmem>>) attributes {dimension_semantics = [#tpu.dimension_semantics<parallel>, #tpu.dimension_semantics<arbitrary>], iteration_bounds = array<i64: 3, 3>, scalar_prefetch = 0 : i64, scratch_operands = 1 : i64, tpu.core_type = #tpu.core_type<tc>, window_params = [{transform_indices = @transform_0, window_bounds = array<i64: 128, 128>}, {pipeline_mode = #tpu.pipeline_mode<synchronous>, transform_indices = @transform_1, window_bounds = array<i64: 384, 128>}, {transform_indices = @transform_2, window_bounds = array<i64: 128, 128>}, {pipeline_mode = #tpu.pipeline_mode<synchronous>, transform_indices = @transform_3, window_bounds = array<i64: 128, 128>}, {pipeline_mode = #tpu.pipeline_mode<synchronous>, transform_indices = @transform_4, window_bounds = array<i64: 128, 128>}, {pipeline_mode = #tpu.pipeline_mode<synchronous>, transform_indices = @transform_5, window_bounds = array<i64: 1, 128>}, {transform_indices = @transform_6, window_bounds = array<i64: 128, 128>}]} {
    %c0_i32 = arith.constant 0 : i32
    %0 = arith.cmpi eq, %arg1, %c0_i32 : i32
    %1 = arith.extui %0 : i1 to i32
    %c0_i32_0 = arith.constant 0 : i32
    %2 = arith.cmpi ne, %1, %c0_i32_0 : i32
    scf.if %2 {
      %cst_8 = arith.constant 0.000000e+00 : f32
      %15 = vector.broadcast %cst_8 : f32 to vector<128x128xf32>
      %c0_9 = arith.constant 0 : index
      %c0_10 = arith.constant 0 : index
      %16 = vector.load %arg9[%c0_9, %c0_10] : memref<128x128xf32, #tpu.memory_space<vmem>>, vector<128x128xf32>
      tpu.vector_store %arg9[%c0_9, %c0_10], %15 {strides = array<i32>} : memref<128x128xf32, #tpu.memory_space<vmem>>, vector<128x128xf32>,
    } else {
    }
    %c128_i32 = arith.constant 128 : i32
    %3 = arith.muli %arg1, %c128_i32 : i32
    %4 = tpu.assume_multiple %3, 128 : i32
    %5 = arith.index_cast %4 : i32 to index
    %c0 = arith.constant 0 : index
    %6 = vector.load %arg3[%5, %c0] : memref<384x128xbf16, #tpu.memory_space<vmem>>, vector<128x128xbf16>
    %c0_1 = arith.constant 0 : index
    %c0_2 = arith.constant 0 : index
    %7 = vector.load %arg9[%c0_1, %c0_2] : memref<128x128xf32, #tpu.memory_space<vmem>>, vector<128x128xf32>
    %c0_3 = arith.constant 0 : index
    %c0_4 = arith.constant 0 : index
    %8 = vector.load %arg2[%c0_3, %c0_4] : memref<128x128xbf16, #tpu.memory_space<vmem>>, vector<128x128xbf16>
    %cst = arith.constant dense<0.000000e+00> : vector<128x128xf32>
    %9 = tpu.matmul %8, %6, %cst {dimension_numbers = #tpu.dot_dimension_numbers<[1], [0], [0], [1], [0, 0, 1, 1], [], []>} : vector<128x128xbf16>, vector<128x128xbf16>, vector<128x128xf32> -> vector<128x128xf32>
    %10 = arith.addf %7, %9 : vector<128x128xf32>
    %c0_5 = arith.constant 0 : index
    %c0_6 = arith.constant 0 : index
    %11 = vector.load %arg9[%c0_5, %c0_6] : memref<128x128xf32, #tpu.memory_space<vmem>>, vector<128x128xf32>
    tpu.vector_store %arg9[%c0_5, %c0_6], %10 {strides = array<i32>} : memref<128x128xf32, #tpu.memory_space<vmem>>, vector<128x128xf32>,
    %c2_i32 = arith.constant 2 : i32
    %12 = arith.cmpi eq, %arg1, %c2_i32 : i32
    %13 = arith.extui %12 : i1 to i32
    %c0_i32_7 = arith.constant 0 : i32
    %14 = arith.cmpi ne, %13, %c0_i32_7 : i32
    scf.if %14 {
      %c0_8 = arith.constant 0 : index
      %c0_9 = arith.constant 0 : index
      %15 = vector.load %arg9[%c0_8, %c0_9] : memref<128x128xf32, #tpu.memory_space<vmem>>, vector<128x128xf32>
      %16 = vector.extract_strided_slice %15 {offsets = [0, 16], sizes = [128, 1], strides = [1, 1]} : vector<128x128xf32> to vector<128x1xf32>
      %cst_10 = arith.constant 1.000000e+00 : f32
      %17 = vector.broadcast %cst_10 : f32 to vector<128x1xf32>
      %18 = arith.maximumf %16, %17 : vector<128x1xf32>
      %19 = tpu.reciprocal %18 {approx = true} : vector<128x1xf32> -> vector<128x1xf32>
      %20 = vector.broadcast %19 : vector<128x1xf32> to vector<128x128xf32>
      %21 = arith.mulf %15, %20 : vector<128x128xf32>
      %22 = arith.truncf %21 : vector<128x128xf32> to vector<128x128xbf16>
      %c0_11 = arith.constant 0 : index
      %c0_12 = arith.constant 0 : index
      %23 = vector.load %arg4[%c0_11, %c0_12] : memref<128x128xbf16, #tpu.memory_space<vmem>>, vector<128x128xbf16>
      %c0_13 = arith.constant 0 : index
      %c0_14 = arith.constant 0 : index
      %24 = vector.load %arg5[%c0_13, %c0_14] : memref<128x128xbf16, #tpu.memory_space<vmem>>, vector<128x128xbf16>
      %cst_15 = arith.constant dense<0.000000e+00> : vector<128x128xf32>
      %25 = tpu.matmul %23, %24, %cst_15 {dimension_numbers = #tpu.dot_dimension_numbers<[1], [0], [0], [1], [0, 0, 1, 1], [], []>} : vector<128x128xbf16>, vector<128x128xbf16>, vector<128x128xf32> -> vector<128x128xf32>
      %c0_16 = arith.constant 0 : index
      %c0_17 = arith.constant 0 : index
      %26 = vector.load %arg6[%c0_16, %c0_17] : memref<128x128xbf16, #tpu.memory_space<vmem>>, vector<128x128xbf16>
      %cst_18 = arith.constant dense<0.000000e+00> : vector<128x128xf32>
      %27 = tpu.matmul %22, %26, %cst_18 {dimension_numbers = #tpu.dot_dimension_numbers<[1], [0], [0], [1], [0, 0, 1, 1], [], []>} : vector<128x128xbf16>, vector<128x128xbf16>, vector<128x128xf32> -> vector<128x128xf32>
      %28 = arith.addf %25, %27 : vector<128x128xf32>
      %c0_19 = arith.constant 0 : index
      %c0_20 = arith.constant 0 : index
      %29 = vector.load %arg7[%c0_19, %c0_20] : memref<1x128xf32, #tpu.memory_space<vmem>>, vector<1x128xf32>
      %30 = vector.broadcast %29 : vector<1x128xf32> to vector<128x128xf32>
      %31 = arith.addf %28, %30 : vector<128x128xf32>
      %cst_21 = arith.constant 0.000000e+00 : f32
      %32 = vector.broadcast %cst_21 : f32 to vector<128x128xf32>
      %33 = arith.maximumf %31, %32 : vector<128x128xf32>
      %34 = arith.mulf %33, %33 : vector<128x128xf32>
      %cst_22 = arith.constant dense<0.000000e+00> : vector<128xf32>
      %35 = vector.multi_reduction <add>, %34, %cst_22 [1] : vector<128x128xf32> to vector<128xf32>
      %36 = vector.shape_cast %35 : vector<128xf32> to vector<128x1xf32>
      %cst_23 = arith.constant 1.000000e-24 : f32
      %37 = vector.broadcast %cst_23 : f32 to vector<128x1xf32>
      %38 = arith.maximumf %36, %37 : vector<128x1xf32>
      %39 = math.rsqrt %38 : vector<128x1xf32>
      %40 = vector.broadcast %39 : vector<128x1xf32> to vector<128x128xf32>
      %41 = arith.mulf %33, %40 : vector<128x128xf32>
      %42 = tpu.iota {dimensions = array<i32: 1>} : vector<128x128xi32>
      %c32_i32 = arith.constant 32 : i32
      %43 = vector.broadcast %c32_i32 : i32 to vector<128x128xi32>
      %44 = arith.cmpi eq, %42, %43 : vector<128x128xi32>
      %cst_24 = arith.constant 1.000000e+00 : f32
      %45 = vector.broadcast %cst_24 : f32 to vector<128x128xf32>
      %46 = arith.select %44, %45, %41 : vector<128x128xi1>, vector<128x128xf32>
      %47 = arith.truncf %46 : vector<128x128xf32> to vector<128x128xbf16>
      %c0_25 = arith.constant 0 : index
      %c0_26 = arith.constant 0 : index
      %48 = vector.load %arg8[%c0_25, %c0_26] : memref<128x128xbf16, #tpu.memory_space<vmem>>, vector<128x128xbf16>
      tpu.vector_store %arg8[%c0_25, %c0_26], %47 {strides = array<i32>} : memref<128x128xbf16, #tpu.memory_space<vmem>>, vector<128x128xbf16>,
    } else {
    }
    return
  }
  func.func @transform_0(%arg0: i32, %arg1: i32) -> (i32, i32) {
    %c0_i32 = arith.constant 0 : i32
    return %arg0, %arg1 : i32, i32
  }
  func.func @transform_1(%arg0: i32, %arg1: i32) -> (i32, i32) {
    %c0_i32 = arith.constant 0 : i32
    %c0_i32_0 = arith.constant 0 : i32
    %c0_i32_1 = arith.constant 0 : i32
    return %c0_i32, %c0_i32_0 : i32, i32
  }
  func.func @transform_2(%arg0: i32, %arg1: i32) -> (i32, i32) {
    %c0_i32 = arith.constant 0 : i32
    %c0_i32_0 = arith.constant 0 : i32
    return %arg0, %c0_i32 : i32, i32
  }
  func.func @transform_3(%arg0: i32, %arg1: i32) -> (i32, i32) {
    %c0_i32 = arith.constant 0 : i32
    %c0_i32_0 = arith.constant 0 : i32
    %c0_i32_1 = arith.constant 0 : i32
    return %c0_i32, %c0_i32_0 : i32, i32
  }
  func.func @transform_4(%arg0: i32, %arg1: i32) -> (i32, i32) {
    %c0_i32 = arith.constant 0 : i32
    %c0_i32_0 = arith.constant 0 : i32
    %c0_i32_1 = arith.constant 0 : i32
    return %c0_i32, %c0_i32_0 : i32, i32
  }
  func.func @transform_5(%arg0: i32, %arg1: i32) -> (i32, i32) {
    %c0_i32 = arith.constant 0 : i32
    %c0_i32_0 = arith.constant 0 : i32
    %c0_i32_1 = arith.constant 0 : i32
    return %c0_i32, %c0_i32_0 : i32, i32
  }
  func.func @transform_6(%arg0: i32, %arg1: i32) -> (i32, i32) {
    %c0_i32 = arith.constant 0 : i32
    %c0_i32_0 = arith.constant 0 : i32
    return %arg0, %c0_i32 : i32, i32
  }
}

</mosaic_0001>

<llo_original>
// kernel: tpu_custom_call.1
$region0: #{tpu_custom_call.1}
  #allocation0 [shape = 'u32[]', space=smem, size = 0x4, offset = 0x4, fixed_abs, tag = 'smem constant byte address 0x4 - core index']
  #allocation1 [shape = 'u32[72,128]{1,0:T(1,128)}', space=vmem, size = 0x9000, scoped, tag = 'internal scratch']
  #allocation2 [shape = 'f32[128,128]{1,0:T(8,128)}', space=vmem, size = 0x10000, scoped, tag = 'scratch operand']
  %s0 = inlined_call_operand.hbm [shape: bf16[384,384], index: 0, kind: input, shape index: {}]
  %s1 = inlined_call_operand.hbm [shape: bf16[384,128], index: 1, kind: input, shape index: {}]
  %s2 = inlined_call_operand.hbm [shape: bf16[384,128], index: 2, kind: input, shape index: {}]
  %s3 = inlined_call_operand.hbm [shape: bf16[128,128], index: 3, kind: input, shape index: {}]
  %s4 = inlined_call_operand.hbm [shape: bf16[128,128], index: 4, kind: input, shape index: {}]
  %s5 = inlined_call_operand.vmem [shape: f32[1,128], index: 5, kind: input, shape index: {}]
  %s6 = inlined_call_operand.hbm [shape: bf16[384,128], index: 6, kind: output, shape index: {}]
  %s7 = sld [smem:[#allocation0]]
  $region85: #{tpu_custom_call.1} parent=0
    _
  %s9 = ssub.s32 1, %s7
  %s10 = scalar_select 0, %s9, %s7
  $region1: #{tpu_custom_call.1} parent=0
    #allocation3 [shape = 'u8[65536]{0}', space=vmem, size = 0x10000, scoped, tag = 'input window, operand 0']
    #allocation4 [shape = 's32[2]{0}', space=sflag, size = 0x8, scoped, tag = 'scoped memory for tpu_custom_call.1']
    #allocation5 [shape = 's32[2]{0}', space=sflag, size = 0x8, scoped, tag = 'scoped memory for tpu_custom_call.1']
    #allocation6 [shape = 'u8[98304]{0}', space=vmem, size = 0x18000, scoped, tag = 'input window, operand 1, single buffered']
    #allocation7 [shape = 's32[1]{0}', space=sflag, size = 0x4, scoped, tag = 'scoped memory for tpu_custom_call.1']
    #allocation8 [shape = 'u8[65536]{0}', space=vmem, size = 0x10000, scoped, tag = 'input window, operand 2']
    #allocation9 [shape = 'u8[32768]{0}', space=vmem, size = 0x8000, scoped, tag = 'input window, operand 3, single buffered']
    #allocation10 [shape = 'u8[32768]{0}', space=vmem, size = 0x8000, scoped, tag = 'input window, operand 4, single buffered']
    #allocation11 [shape = 's32[1]{0}', space=sflag, size = 0x4, scoped, tag = 'scoped memory for tpu_custom_call.1']
    #allocation12 [shape = 'u8[65536]{0}', space=vmem, size = 0x10000, scoped, tag = 'output window, operand 0']
    %11 = vsyncpa [#allocation4], 0
    %s12 = scalar_lea.sflag [#allocation4], 1
    %13 = vsyncpa %s12, 0
    %14 = vsyncpa [#allocation7], 0
    %15 = vsyncpa [#allocation11], 0
    %16 = vsyncpa [#allocation5], 0
    %s17 = scalar_lea.sflag [#allocation5], 1
    %18 = vsyncpa %s17, 0
    loop: start=0, step=1, limit=11
    $region2: #{tpu_custom_call.1} parent=1 // loop_pre_header
      _
    $region3: #{tpu_custom_call.1} parent=1 // loop_header
      %s20 = sphi 0, %s24
      %p21 = scmp.ge.s32.totalorder %s20, 11
      %s27 = sphi 0, %s39
      %s28 = sphi 0, %s35
      %s29 = sphi 0, %s27
      %s30 = sphi 0, %s28
      %s31 = sphi 0, %s29
      %s32 = sphi 0, %s30
      %s44 = sphi 0, %s46
      %s47 = sphi 0, %s44
      %s48 = sphi 0, %s47
      %s64 = sphi 0, %s48
      %s68 = sphi 0, %s68
      %s70 = sphi 0, %s68
      %s71 = sphi 0, %s70
      %s85 = sphi 0, %s71
      %s91 = sphi 0, %s93
      %s94 = sphi 0, %s91
      %s95 = sphi 0, %s94
      %s111 = sphi 0, %s95
      %s115 = sphi 0, %s115
      %s117 = sphi 0, %s115
      %s118 = sphi 0, %s117
      %s132 = sphi 0, %s118
      %s136 = sphi 0, %s136
      %s138 = sphi 0, %s136
      %s139 = sphi 0, %s138
      %s153 = sphi 0, %s139
      %s157 = sphi 0, %s157
      %s159 = sphi 0, %s157
      %s160 = sphi 0, %s159
      %s174 = sphi 0, %s160
      %s180 = sphi 0, %s182
      %s183 = sphi 0, %s180
      %s184 = sphi 0, %s183
      %s200 = sphi 0, %s184
    $region4: #{tpu_custom_call.1} parent=1 // loop_header_branch
      %23 = sbr.rel (%p21) target = $region8
    $region5: #{tpu_custom_call.1} parent=1 // loop_body
      %s25 = ssub.s32 %s20, 1
      %s26 = ssub.s32 %s20, 2
      %s33 = sadd.s32 1, %s28
      %p34 = scmp.ge.s32.totalorder %s33, 3
      %s35 = scalar_select %p34, 0, %s33
      %s36 = sadd.s32 1, %s27
      %s37 = scalar_select %p34, %s36, %s27
      %p38 = scmp.ge.s32.totalorder %s37, 3
      %s39 = scalar_select %p38, 0, %s37
      %s40 = ssub.s32 %s27, %s39
      %s41 = ssub.s32 %s28, %s35
      %s42 = sor.u32 %s40, %s41
      %p43 = scmp.eq.s32.totalorder %s42, 0
      %s45 = sadd.s32 %s44, 1
      %s46 = scalar_select %p43, %s44, %s45
      %p49 = pneg %p43
      %p50 = scmp.eq.s32.totalorder %s20, 8
      %p51 = por %p49, %p50
      %p52 = scmp.ne.s32.totalorder %s44, %s47
      %p53 = scmp.eq.s32.totalorder %s20, 0
      %p54 = por %p52, %p53
      %p55 = scmp.ne.s32.totalorder %s44, %s47
      %p56 = scmp.eq.s32.totalorder %s25, 8
      %p57 = por %p55, %p56
      %p58 = scmp.ne.s32.totalorder %s47, %s48
      %p59 = scmp.eq.s32.totalorder %s25, 0
      %p60 = por %p58, %p59
      %p61 = scmp.ne.s32.totalorder %s47, %s48
      %p62 = scmp.eq.s32.totalorder %s26, 8
      %p63 = por %p61, %p62
      %p65 = scmp.ne.s32.totalorder %s48, %s64
      %p66 = scmp.eq.s32.totalorder %s26, 0
      %p67 = por %p65, %p66
      %s69 = sadd.s32 %s68, 1
      %p72 = scmp.eq.s32.totalorder %s20, 8
      %p73 = scmp.ne.s32.totalorder %s68, %s70
      %p74 = scmp.eq.s32.totalorder %s20, 0
      %p75 = por %p73, %p74
      %p76 = scmp.ne.s32.totalorder %s68, %s70
      %p77 = scmp.eq.s32.totalorder %s25, 8
      %p78 = por %p76, %p77
      %p79 = scmp.ne.s32.totalorder %s70, %s71
      %p80 = scmp.eq.s32.totalorder %s25, 0
      %p81 = por %p79, %p80
      %p82 = scmp.ne.s32.totalorder %s70, %s71
      %p83 = scmp.eq.s32.totalorder %s26, 8
      %p84 = por %p82, %p83
      %p86 = scmp.ne.s32.totalorder %s71, %s85
      %p87 = scmp.eq.s32.totalorder %s26, 0
      %p88 = por %p86, %p87
      %s89 = ssub.s32 %s27, %s39
      %p90 = scmp.eq.s32.totalorder %s89, 0
      %s92 = sadd.s32 %s91, 1
      %s93 = scalar_select %p90, %s91, %s92
      %p96 = pneg %p90
      %p97 = scmp.eq.s32.totalorder %s20, 8
      %p98 = por %p96, %p97
      %p99 = scmp.ne.s32.totalorder %s91, %s94
      %p100 = scmp.eq.s32.totalorder %s20, 0
      %p101 = por %p99, %p100
      %p102 = scmp.ne.s32.totalorder %s91, %s94
      %p103 = scmp.eq.s32.totalorder %s25, 8
      %p104 = por %p102, %p103
      %p105 = scmp.ne.s32.totalorder %s94, %s95
      %p106 = scmp.eq.s32.totalorder %s25, 0
      %p107 = por %p105, %p106
      %p108 = scmp.ne.s32.totalorder %s94, %s95
      %p109 = scmp.eq.s32.totalorder %s26, 8
      %p110 = por %p108, %p109
      %p112 = scmp.ne.s32.totalorder %s95, %s111
      %p113 = scmp.eq.s32.totalorder %s26, 0
      %p114 = por %p112, %p113
      %s116 = sadd.s32 %s115, 1
      %p119 = scmp.eq.s32.totalorder %s20, 8
      %p120 = scmp.ne.s32.totalorder %s115, %s117
      %p121 = scmp.eq.s32.totalorder %s20, 0
      %p122 = por %p120, %p121
      %p123 = scmp.ne.s32.totalorder %s115, %s117
      %p124 = scmp.eq.s32.totalorder %s25, 8
      %p125 = por %p123, %p124
      %p126 = scmp.ne.s32.totalorder %s117, %s118
      %p127 = scmp.eq.s32.totalorder %s25, 0
      %p128 = por %p126, %p127
      %p129 = scmp.ne.s32.totalorder %s117, %s118
      %p130 = scmp.eq.s32.totalorder %s26, 8
      %p131 = por %p129, %p130
      %p133 = scmp.ne.s32.totalorder %s118, %s132
      %p134 = scmp.eq.s32.totalorder %s26, 0
      %p135 = por %p133, %p134
      %s137 = sadd.s32 %s136, 1
      %p140 = scmp.eq.s32.totalorder %s20, 8
      %p141 = scmp.ne.s32.totalorder %s136, %s138
      %p142 = scmp.eq.s32.totalorder %s20, 0
      %p143 = por %p141, %p142
      %p144 = scmp.ne.s32.totalorder %s136, %s138
      %p145 = scmp.eq.s32.totalorder %s25, 8
      %p146 = por %p144, %p145
      %p147 = scmp.ne.s32.totalorder %s138, %s139
      %p148 = scmp.eq.s32.totalorder %s25, 0
      %p149 = por %p147, %p148
      %p150 = scmp.ne.s32.totalorder %s138, %s139
      %p151 = scmp.eq.s32.totalorder %s26, 8
      %p152 = por %p150, %p151
      %p154 = scmp.ne.s32.totalorder %s139, %s153
      %p155 = scmp.eq.s32.totalorder %s26, 0
      %p156 = por %p154, %p155
      %s158 = sadd.s32 %s157, 1
      %p161 = scmp.eq.s32.totalorder %s20, 8
      %p162 = scmp.ne.s32.totalorder %s157, %s159
      %p163 = scmp.eq.s32.totalorder %s20, 0
      %p164 = por %p162, %p163
      %p165 = scmp.ne.s32.totalorder %s157, %s159
      %p166 = scmp.eq.s32.totalorder %s25, 8
      %p167 = por %p165, %p166
      %p168 = scmp.ne.s32.totalorder %s159, %s160
      %p169 = scmp.eq.s32.totalorder %s25, 0
      %p170 = por %p168, %p169
      %p171 = scmp.ne.s32.totalorder %s159, %s160
      %p172 = scmp.eq.s32.totalorder %s26, 8
      %p173 = por %p171, %p172
      %p175 = scmp.ne.s32.totalorder %s160, %s174
      %p176 = scmp.eq.s32.totalorder %s26, 0
      %p177 = por %p175, %p176
      %s178 = ssub.s32 %s27, %s39
      %p179 = scmp.eq.s32.totalorder %s178, 0
      %s181 = sadd.s32 %s180, 1
      %s182 = scalar_select %p179, %s180, %s181
      %p185 = pneg %p179
      %p186 = scmp.eq.s32.totalorder %s20, 8
      %p187 = por %p185, %p186
      %p188 = scmp.ne.s32.totalorder %s180, %s183
      %p189 = scmp.eq.s32.totalorder %s20, 0
      %p190 = por %p188, %p189
      %p191 = scmp.ne.s32.totalorder %s180, %s183
      %p192 = scmp.eq.s32.totalorder %s25, 8
      %p193 = por %p191, %p192
      %p194 = scmp.ne.s32.totalorder %s183, %s184
      %p195 = scmp.eq.s32.totalorder %s25, 0
      %p196 = por %p194, %p195
      %p197 = scmp.ne.s32.totalorder %s183, %s184
      %p198 = scmp.eq.s32.totalorder %s26, 8
      %p199 = por %p197, %p198
      %p201 = scmp.ne.s32.totalorder %s184, %s200
      %p202 = scmp.eq.s32.totalorder %s26, 0
      %p203 = por %p201, %p202
      %p204 = scmp.le.s32.totalorder 1, %s20
      %p205 = scmp.lt.s32.totalorder %s20, 10
      %p206 = pnand %p204, %p205
      %p207 = pneg %p206
      // Predicated region
      $region9: #{tpu_custom_call.1} parent=5 // pred_check
        _
      $region10: #{tpu_custom_call.1} parent=5 // pred_check_branch
        %209 = sbr.rel (%p206) target = $region12
      $region11: #{tpu_custom_call.1} parent=5 // pred_region
        %s210 = ssub.s32 %s20, 1
        // Predicated region
        $region13: #{tpu_custom_call.1} parent=11 // pred_check
          %p211 = pneg %p81
        $region14: #{tpu_custom_call.1} parent=11 // pred_check_branch
          %213 = sbr.rel (%p211) target = $region16
        $region15: #{tpu_custom_call.1} parent=11 // pred_region
          %215 = vsyncadd [#allocation7], 0
          %s216 = sshll.u32 %s1, 4
          %s217 = int_to_ptr.hbm [resolvable:$true] %s216
          %s218 = sshll.u32 [#allocation6], 4
          %s219 = int_to_ptr.vmem [resolvable:$true] %s218
          %224 = dma.hbm_to_vmem [thread:$0]  %s217, 3072, %s219, [#allocation7], 64, 64, 4
        $region16: #{tpu_custom_call.1} parent=11 // pred_fallthru
          _
        // Predicated region
        $region17: #{tpu_custom_call.1} parent=11 // pred_check
          %p225 = pneg %p128
        $region18: #{tpu_custom_call.1} parent=11 // pred_check_branch
          %227 = sbr.rel (%p225) target = $region20
        $region19: #{tpu_custom_call.1} parent=11 // pred_region
          %229 = vsyncadd [#allocation7], 0
          %s230 = sshll.u32 %s3, 4
          %s231 = int_to_ptr.hbm [resolvable:$true] %s230
          %s232 = sshll.u32 [#allocation9], 4
          %s233 = int_to_ptr.vmem [resolvable:$true] %s232
          %238 = dma.hbm_to_vmem [thread:$0]  %s231, 1024, %s233, [#allocation7], 64, 64, 4
        $region20: #{tpu_custom_call.1} parent=11 // pred_fallthru
          _
        // Predicated region
        $region21: #{tpu_custom_call.1} parent=11 // pred_check
          %p239 = pneg %p149
        $region22: #{tpu_custom_call.1} parent=11 // pred_check_branch
          %241 = sbr.rel (%p239) target = $region24
        $region23: #{tpu_custom_call.1} parent=11 // pred_region
          %243 = vsyncadd [#allocation11], 0
          %s244 = sshll.u32 %s4, 4
          %s245 = int_to_ptr.hbm [resolvable:$true] %s244
          %s246 = sshll.u32 [#allocation10], 4
          %s247 = int_to_ptr.vmem [resolvable:$true] %s246
          %252 = dma.hbm_to_vmem [thread:$0]  %s245, 1024, %s247, [#allocation11], 64, 64, 4
        $region24: #{tpu_custom_call.1} parent=11 // pred_fallthru
          _
        // Predicated region
        $region25: #{tpu_custom_call.1} parent=11 // pred_check
          %p253 = pneg %p170
        $region26: #{tpu_custom_call.1} parent=11 // pred_check_branch
          %255 = sbr.rel (%p253) target = $region28
        $region27: #{tpu_custom_call.1} parent=11 // pred_region
          _
        $region28: #{tpu_custom_call.1} parent=11 // pred_fallthru
          _
      $region12: #{tpu_custom_call.1} parent=5 // pred_fallthru
        _
      %p256 = scmp.lt.s32.totalorder %s20, 9
      // Predicated region
      $region29: #{tpu_custom_call.1} parent=5 // pred_check
        %p257 = pneg %p256
      $region30: #{tpu_custom_call.1} parent=5 // pred_check_branch
        %259 = sbr.rel (%p257) target = $region32
      $region31: #{tpu_custom_call.1} parent=5 // pred_region
        // Predicated region
        $region33: #{tpu_custom_call.1} parent=31 // pred_check
          %p260 = pneg %p54
        $region34: #{tpu_custom_call.1} parent=31 // pred_check_branch
          %262 = sbr.rel (%p260) target = $region36
        $region35: #{tpu_custom_call.1} parent=31 // pred_region
          %s263 = sand.u32 %s20, 1
          %s264 = scalar_lea.sflag [#allocation4], %s263
          %s265 = sand.u32 %s44, 1
          %s266 = smul.addr %s265, 64
          %s267 = scalar_lea.vmem [#allocation3], %s266
          %s268 = smul.u32 16, %s27
          %270 = vsyncadd %s264, 0
          %s271 = smul.addr %s268, 3
          %s272 = sadd.s32 %s28, %s271
          %s273 = smul.addr %s272, 4
          %s274 = scalar_lea.hbm %s0, %s273
          %s275 = sshll.u32 %s274, 4
          %s276 = int_to_ptr.hbm [resolvable:$true] %s275
          %s277 = sshll.u32 %s267, 4
          %s278 = int_to_ptr.vmem [resolvable:$true] %s277
          %283 = dma.hbm_to_vmem [thread:$0]  %s276, 1024, %s278, %s264, 192, 64, 4
        $region36: #{tpu_custom_call.1} parent=31 // pred_fallthru
          _
        // Predicated region
        $region37: #{tpu_custom_call.1} parent=31 // pred_check
          %p284 = pneg %p101
        $region38: #{tpu_custom_call.1} parent=31 // pred_check_branch
          %286 = sbr.rel (%p284) target = $region40
        $region39: #{tpu_custom_call.1} parent=31 // pred_region
          %s287 = sand.u32 %s20, 1
          %s288 = scalar_lea.sflag [#allocation4], %s287
          %s289 = sand.u32 %s91, 1
          %s290 = smul.addr %s289, 64
          %s291 = scalar_lea.vmem [#allocation8], %s290
          %s292 = smul.u32 16, %s27
          %294 = vsyncadd %s288, 0
          %s295 = smul.addr %s292, 4
          %s296 = scalar_lea.hbm %s2, %s295
          %s297 = sshll.u32 %s296, 4
          %s298 = int_to_ptr.hbm [resolvable:$true] %s297
          %s299 = sshll.u32 %s291, 4
          %s300 = int_to_ptr.vmem [resolvable:$true] %s299
          %305 = dma.hbm_to_vmem [thread:$0]  %s298, 1024, %s300, %s288, 64, 64, 4
        $region40: #{tpu_custom_call.1} parent=31 // pred_fallthru
          _
      $region32: #{tpu_custom_call.1} parent=5 // pred_fallthru
        _
      %p306 = scmp.le.s32.totalorder 1, %s20
      %p307 = scmp.lt.s32.totalorder %s20, 10
      %p308 = pnand %p306, %p307
      %p309 = pneg %p308
      // Predicated region
      $region41: #{tpu_custom_call.1} parent=5 // pred_check
        _
      $region42: #{tpu_custom_call.1} parent=5 // pred_check_branch
        %311 = sbr.rel (%p308) target = $region44
      $region43: #{tpu_custom_call.1} parent=5 // pred_region
        %s312 = ssub.s32 %s20, 1
        %s313 = sand.u32 %s25, 1
        %s314 = scalar_lea.sflag [#allocation4], %s313
        %s315 = sand.u32 %s47, 1
        %s316 = smul.addr %s315, 64
        %s317 = scalar_lea.vmem [#allocation3], %s316
        // Predicated region
        $region45: #{tpu_custom_call.1} parent=43 // pred_check
          %p318 = pneg %p60
        $region46: #{tpu_custom_call.1} parent=43 // pred_check_branch
          %320 = sbr.rel (%p318) target = $region48
        $region47: #{tpu_custom_call.1} parent=43 // pred_region
          %322 = dma.done %s314, 1024
        $region48: #{tpu_custom_call.1} parent=43 // pred_fallthru
          _
        // Predicated region
        $region49: #{tpu_custom_call.1} parent=43 // pred_check
          %p323 = pneg %p81
        $region50: #{tpu_custom_call.1} parent=43 // pred_check_branch
          %325 = sbr.rel (%p323) target = $region52
        $region51: #{tpu_custom_call.1} parent=43 // pred_region
          %327 = dma.done [#allocation7], 3072
        $region52: #{tpu_custom_call.1} parent=43 // pred_fallthru
          _
        %s328 = sand.u32 %s25, 1
        %s329 = scalar_lea.sflag [#allocation4], %s328
        %s330 = sand.u32 %s94, 1
        %s331 = smul.addr %s330, 64
        %s332 = scalar_lea.vmem [#allocation8], %s331
        // Predicated region
        $region53: #{tpu_custom_call.1} parent=43 // pred_check
          %p333 = pneg %p107
        $region54: #{tpu_custom_call.1} parent=43 // pred_check_branch
          %335 = sbr.rel (%p333) target = $region56
        $region55: #{tpu_custom_call.1} parent=43 // pred_region
          %337 = dma.done %s329, 1024
        $region56: #{tpu_custom_call.1} parent=43 // pred_fallthru
          _
        // Predicated region
        $region57: #{tpu_custom_call.1} parent=43 // pred_check
          %p338 = pneg %p128
        $region58: #{tpu_custom_call.1} parent=43 // pred_check_branch
          %340 = sbr.rel (%p338) target = $region60
        $region59: #{tpu_custom_call.1} parent=43 // pred_region
          %342 = dma.done [#allocation7], 1024
        $region60: #{tpu_custom_call.1} parent=43 // pred_fallthru
          _
        // Predicated region
        $region61: #{tpu_custom_call.1} parent=43 // pred_check
          %p343 = pneg %p149
        $region62: #{tpu_custom_call.1} parent=43 // pred_check_branch
          %345 = sbr.rel (%p343) target = $region64
        $region63: #{tpu_custom_call.1} parent=43 // pred_region
          %347 = dma.done [#allocation11], 1024
        $region64: #{tpu_custom_call.1} parent=43 // pred_fallthru
          _
        %s348 = sand.u32 %s25, 1
        %s349 = scalar_lea.sflag [#allocation4], %s348
        %s350 = sand.u32 %s47, 1
        %s351 = smul.addr %s350, 64
        %s352 = scalar_lea.vmem [#allocation3], %s351
        %p353 = pneg %p60
        %p354 = pneg %p57
        %p355 = pneg %p81
        %p356 = pneg %p78
        %s357 = sand.u32 %s25, 1
        %s358 = scalar_lea.sflag [#allocation4], %s357
        %s359 = sand.u32 %s94, 1
        %s360 = smul.addr %s359, 64
        %s361 = scalar_lea.vmem [#allocation8], %s360
        %p362 = pneg %p107
        %p363 = pneg %p104
        %p364 = pneg %p128
        %p365 = pneg %p125
        %p366 = pneg %p149
        %p367 = pneg %p146
        %p368 = pneg %p170
        %p369 = pneg %p167
        %p370 = pneg %p196
        %p371 = pneg %p193
        %s372 = sand.u32 %s183, 1
        %s373 = scalar_lea.sflag [#allocation5], %s372
        %s374 = sand.u32 %s183, 1
        %s375 = smul.addr %s374, 64
        %s376 = scalar_lea.vmem [#allocation12], %s375
        %s377 = smul.u32 16, %s29
        %s378 = smul.u32 16, %s29
        %s379 = smul.u32 16, %s29
        %p380 = scmp.eq.s32.totalorder %s30, 0
        // Predicated region
        $region65: #{tpu_custom_call.1} parent=43 // pred_check
          %p381 = pneg %p380
        $region66: #{tpu_custom_call.1} parent=43 // pred_check_branch
          %383 = sbr.rel (%p381) target = $region68
        $region67: #{tpu_custom_call.1} parent=43 // pred_region
          %384 = vst [vmem:[#allocation2] sm:$0xff] 0.0
          %385 = vst [vmem:[#allocation2 + $0x8] sm:$0xff] 0.0
          %386 = vst [vmem:[#allocation2 + $0x10] sm:$0xff] 0.0
          %387 = vst [vmem:[#allocation2 + $0x18] sm:$0xff] 0.0
          %388 = vst [vmem:[#allocation2 + $0x20] sm:$0xff] 0.0
          %389 = vst [vmem:[#allocation2 + $0x28] sm:$0xff] 0.0
          %390 = vst [vmem:[#allocation2 + $0x30] sm:$0xff] 0.0
          %391 = vst [vmem:[#allocation2 + $0x38] sm:$0xff] 0.0
          %392 = vst [vmem:[#allocation2 + $0x40] sm:$0xff] 0.0
          %393 = vst [vmem:[#allocation2 + $0x48] sm:$0xff] 0.0
          %394 = vst [vmem:[#allocation2 + $0x50] sm:$0xff] 0.0
          %395 = vst [vmem:[#allocation2 + $0x58] sm:$0xff] 0.0
          %396 = vst [vmem:[#allocation2 + $0x60] sm:$0xff] 0.0
          %397 = vst [vmem:[#allocation2 + $0x68] sm:$0xff] 0.0
          %398 = vst [vmem:[#allocation2 + $0x70] sm:$0xff] 0.0
          %399 = vst [vmem:[#allocation2 + $0x78] sm:$0xff] 0.0
        $region68: #{tpu_custom_call.1} parent=43 // pred_fallthru
          _
        %s400 = smul.u32 %s30, 128
        %s401 = sshra.s32 %s400, 3
        %s402 = sand.u32 %s400, 7
        %s403 = smul.addr %s401, 4
        %s404 = scalar_lea.vmem [#allocation6], %s403
        %v405 = vld [vmem:[%s404] sm:$0xf]
        %v406 = vld [vmem:[%s404 + $0x4] sm:$0xf]
        %v407 = vld [vmem:[%s404 + $0x8] sm:$0xf]
        %v408 = vld [vmem:[%s404 + $0xc] sm:$0xf]
        %v409 = vld [vmem:[%s404 + $0x10] sm:$0xf]
        %v410 = vld [vmem:[%s404 + $0x14] sm:$0xf]
        %v411 = vld [vmem:[%s404 + $0x18] sm:$0xf]
        %v412 = vld [vmem:[%s404 + $0x1c] sm:$0xf]
        %v413 = vld [vmem:[%s404 + $0x20] sm:$0xf]
        %v414 = vld [vmem:[%s404 + $0x24] sm:$0xf]
        %v415 = vld [vmem:[%s404 + $0x28] sm:$0xf]
        %v416 = vld [vmem:[%s404 + $0x2c] sm:$0xf]
        %v417 = vld [vmem:[%s404 + $0x30] sm:$0xf]
        %v418 = vld [vmem:[%s404 + $0x34] sm:$0xf]
        %v419 = vld [vmem:[%s404 + $0x38] sm:$0xf]
        %v420 = vld [vmem:[%s404 + $0x3c] sm:$0xf]
        %v421 = vld [vmem:[#allocation2] sm:$0xff]
        %v422 = vld [vmem:[#allocation2 + $0x8] sm:$0xff]
        %v423 = vld [vmem:[#allocation2 + $0x10] sm:$0xff]
        %v424 = vld [vmem:[#allocation2 + $0x18] sm:$0xff]
        %v425 = vld [vmem:[#allocation2 + $0x20] sm:$0xff]
        %v426 = vld [vmem:[#allocation2 + $0x28] sm:$0xff]
        %v427 = vld [vmem:[#allocation2 + $0x30] sm:$0xff]
        %v428 = vld [vmem:[#allocation2 + $0x38] sm:$0xff]
        %v429 = vld [vmem:[#allocation2 + $0x40] sm:$0xff]
        %v430 = vld [vmem:[#allocation2 + $0x48] sm:$0xff]
        %v431 = vld [vmem:[#allocation2 + $0x50] sm:$0xff]
        %v432 = vld [vmem:[#allocation2 + $0x58] sm:$0xff]
        %v433 = vld [vmem:[#allocation2 + $0x60] sm:$0xff]
        %v434 = vld [vmem:[#allocation2 + $0x68] sm:$0xff]
        %v435 = vld [vmem:[#allocation2 + $0x70] sm:$0xff]
        %v436 = vld [vmem:[#allocation2 + $0x78] sm:$0xff]
        %v437 = vld [vmem:[%s317] sm:$0xf]
        %v438 = vld [vmem:[%s317 + $0x4] sm:$0xf]
        %v439 = vld [vmem:[%s317 + $0x8] sm:$0xf]
        %v440 = vld [vmem:[%s317 + $0xc] sm:$0xf]
        %v441 = vld [vmem:[%s317 + $0x10] sm:$0xf]
        %v442 = vld [vmem:[%s317 + $0x14] sm:$0xf]
        %v443 = vld [vmem:[%s317 + $0x18] sm:$0xf]
        %v444 = vld [vmem:[%s317 + $0x1c] sm:$0xf]
        %v445 = vld [vmem:[%s317 + $0x20] sm:$0xf]
        %v446 = vld [vmem:[%s317 + $0x24] sm:$0xf]
        %v447 = vld [vmem:[%s317 + $0x28] sm:$0xf]
        %v448 = vld [vmem:[%s317 + $0x2c] sm:$0xf]
        %v449 = vld [vmem:[%s317 + $0x30] sm:$0xf]
        %v450 = vld [vmem:[%s317 + $0x34] sm:$0xf]
        %v451 = vld [vmem:[%s317 + $0x38] sm:$0xf]
        %v452 = vld [vmem:[%s317 + $0x3c] sm:$0xf]
        %v469 = vunpack.c.l.b16 %v437
        %v470 = vunpack.c.l.b16 %v438
        %v471 = vunpack.c.l.b16 %v439
        %v472 = vunpack.c.l.b16 %v440
        %v473 = vunpack.c.l.b16 %v441
        %v474 = vunpack.c.l.b16 %v442
        %v475 = vunpack.c.l.b16 %v443
        %v476 = vunpack.c.l.b16 %v444
        %v477 = vunpack.c.l.b16 %v445
        %v478 = vunpack.c.l.b16 %v446
        %v479 = vunpack.c.l.b16 %v447
        %v480 = vunpack.c.l.b16 %v448
        %v481 = vunpack.c.l.b16 %v449
        %v482 = vunpack.c.l.b16 %v450
        %v483 = vunpack.c.l.b16 %v451
        %v484 = vunpack.c.l.b16 %v452
        %v485 = vpack.c.b16 %v470, %v469
        %v486 = vpack.c.b16 %v472, %v471
        %v487 = vpack.c.b16 %v474, %v473
        %v488 = vpack.c.b16 %v476, %v475
        %v489 = vpack.c.b16 %v478, %v477
        %v490 = vpack.c.b16 %v480, %v479
        %v491 = vpack.c.b16 %v482, %v481
        %v492 = vpack.c.b16 %v484, %v483
        %v517 = vunpack.c.l.b16 %v405
        %v518 = vunpack.c.l.b16 %v406
        %v519 = vunpack.c.l.b16 %v407
        %v520 = vunpack.c.l.b16 %v408
        %v521 = vunpack.c.l.b16 %v409
        %v522 = vunpack.c.l.b16 %v410
        %v523 = vunpack.c.l.b16 %v411
        %v524 = vunpack.c.l.b16 %v412
        %v525 = vunpack.c.l.b16 %v413
        %v526 = vunpack.c.l.b16 %v414
        %v527 = vunpack.c.l.b16 %v415
        %v528 = vunpack.c.l.b16 %v416
        %v529 = vunpack.c.l.b16 %v417
        %v530 = vunpack.c.l.b16 %v418
        %v531 = vunpack.c.l.b16 %v419
        %v532 = vunpack.c.l.b16 %v420
        %v533 = vpack.c.b16 %v518, %v517
        %v534 = vpack.c.b16 %v520, %v519
        %v535 = vpack.c.b16 %v522, %v521
        %v536 = vpack.c.b16 %v524, %v523
        %v537 = vpack.c.b16 %v526, %v525
        %v538 = vpack.c.b16 %v528, %v527
        %v539 = vpack.c.b16 %v530, %v529
        %v540 = vpack.c.b16 %v532, %v531
        %549 = vmatpush.bf16.msra.mxu0 %v540
        %550 = vmatpush.bf16.msra.mxu0 %v539
        %551 = vmatpush.bf16.msra.mxu0 %v538
        %552 = vmatpush.bf16.msra.mxu0 %v537
        %553 = vmatpush.bf16.msra.mxu0 %v536
        %554 = vmatpush.bf16.msra.mxu0 %v535
        %555 = vmatpush.bf16.msra.mxu0 %v534
        %556 = vmatpush.bf16.msra.mxu0 %v533
        %557 = vmatmul.bf16.gmra.mxu0 %v485
        %v558 = vpop.f32.mrf.mxu0
        %v559 = vadd.f32 0.0, %v558
        %v560 = vpop.f32.mrf.mxu0
        %v561 = vadd.f32 0.0, %v560
        %562 = vmatmul.bf16.gmra.mxu0 %v486
        %v563 = vpop.f32.mrf.mxu0
        %v564 = vadd.f32 0.0, %v563
        %v565 = vpop.f32.mrf.mxu0
        %v566 = vadd.f32 0.0, %v565
        %567 = vmatmul.bf16.gmra.mxu0 %v487
        %v568 = vpop.f32.mrf.mxu0
        %v569 = vadd.f32 0.0, %v568
        %v570 = vpop.f32.mrf.mxu0
        %v571 = vadd.f32 0.0, %v570
        %572 = vmatmul.bf16.gmra.mxu0 %v488
        %v573 = vpop.f32.mrf.mxu0
        %v574 = vadd.f32 0.0, %v573
        %v575 = vpop.f32.mrf.mxu0
        %v576 = vadd.f32 0.0, %v575
        %577 = vmatmul.bf16.gmra.mxu0 %v489
        %v578 = vpop.f32.mrf.mxu0
        %v579 = vadd.f32 0.0, %v578
        %v580 = vpop.f32.mrf.mxu0
        %v581 = vadd.f32 0.0, %v580
        %582 = vmatmul.bf16.gmra.mxu0 %v490
        %v583 = vpop.f32.mrf.mxu0
        %v584 = vadd.f32 0.0, %v583
        %v585 = vpop.f32.mrf.mxu0
        %v586 = vadd.f32 0.0, %v585
        %587 = vmatmul.bf16.gmra.mxu0 %v491
        %v588 = vpop.f32.mrf.mxu0
        %v589 = vadd.f32 0.0, %v588
        %v590 = vpop.f32.mrf.mxu0
        %v591 = vadd.f32 0.0, %v590
        %592 = vmatmul.bf16.gmra.mxu0 %v492
        %v593 = vpop.f32.mrf.mxu0
        %v594 = vadd.f32 0.0, %v593
        %v595 = vpop.f32.mrf.mxu0
        %v596 = vadd.f32 0.0, %v595
        %597 = vdwg.mxu0
        %v598 = vadd.f32 %v421, %v559
        %v599 = vadd.f32 %v422, %v561
        %v600 = vadd.f32 %v423, %v564
        %v601 = vadd.f32 %v424, %v566
        %v602 = vadd.f32 %v425, %v569
        %v603 = vadd.f32 %v426, %v571
        %v604 = vadd.f32 %v427, %v574
        %v605 = vadd.f32 %v428, %v576
        %v606 = vadd.f32 %v429, %v579
        %v607 = vadd.f32 %v430, %v581
        %v608 = vadd.f32 %v431, %v584
        %v609 = vadd.f32 %v432, %v586
        %v610 = vadd.f32 %v433, %v589
        %v611 = vadd.f32 %v434, %v591
        %v612 = vadd.f32 %v435, %v594
        %v613 = vadd.f32 %v436, %v596
        %614 = vst [vmem:[#allocation2] sm:$0xff] %v598
        %615 = vst [vmem:[#allocation2 + $0x8] sm:$0xff] %v599
        %616 = vst [vmem:[#allocation2 + $0x10] sm:$0xff] %v600
        %617 = vst [vmem:[#allocation2 + $0x18] sm:$0xff] %v601
        %618 = vst [vmem:[#allocation2 + $0x20] sm:$0xff] %v602
        %619 = vst [vmem:[#allocation2 + $0x28] sm:$0xff] %v603
        %620 = vst [vmem:[#allocation2 + $0x30] sm:$0xff] %v604
        %621 = vst [vmem:[#allocation2 + $0x38] sm:$0xff] %v605
        %622 = vst [vmem:[#allocation2 + $0x40] sm:$0xff] %v606
        %623 = vst [vmem:[#allocation2 + $0x48] sm:$0xff] %v607
        %624 = vst [vmem:[#allocation2 + $0x50] sm:$0xff] %v608
        %625 = vst [vmem:[#allocation2 + $0x58] sm:$0xff] %v609
        %626 = vst [vmem:[#allocation2 + $0x60] sm:$0xff] %v610
        %627 = vst [vmem:[#allocation2 + $0x68] sm:$0xff] %v611
        %628 = vst [vmem:[#allocation2 + $0x70] sm:$0xff] %v612
        %629 = vst [vmem:[#allocation2 + $0x78] sm:$0xff] %v613
        %p630 = scmp.eq.s32.totalorder %s30, 2
        // Predicated region
        $region69: #{tpu_custom_call.1} parent=43 // pred_check
          %p631 = pneg %p630
        $region70: #{tpu_custom_call.1} parent=43 // pred_check_branch
          %633 = sbr.rel (%p631) target = $region72
        $region71: #{tpu_custom_call.1} parent=43 // pred_region
          %v634 = vld [vmem:[#allocation2] sm:$0xff]
          %v635 = vld [vmem:[#allocation2 + $0x8] sm:$0xff]
          %v636 = vld [vmem:[#allocation2 + $0x10] sm:$0xff]
          %v637 = vld [vmem:[#allocation2 + $0x18] sm:$0xff]
          %v638 = vld [vmem:[#allocation2 + $0x20] sm:$0xff]
          %v639 = vld [vmem:[#allocation2 + $0x28] sm:$0xff]
          %v640 = vld [vmem:[#allocation2 + $0x30] sm:$0xff]
          %v641 = vld [vmem:[#allocation2 + $0x38] sm:$0xff]
          %v642 = vld [vmem:[#allocation2 + $0x40] sm:$0xff]
          %v643 = vld [vmem:[#allocation2 + $0x48] sm:$0xff]
          %v644 = vld [vmem:[#allocation2 + $0x50] sm:$0xff]
          %v645 = vld [vmem:[#allocation2 + $0x58] sm:$0xff]
          %v646 = vld [vmem:[#allocation2 + $0x60] sm:$0xff]
          %v647 = vld [vmem:[#allocation2 + $0x68] sm:$0xff]
          %v648 = vld [vmem:[#allocation2 + $0x70] sm:$0xff]
          %v649 = vld [vmem:[#allocation2 + $0x78] sm:$0xff]
          %v650 = vmax.f32 %v634, 1.0
          %v651 = vmax.f32 %v635, 1.0
          %v652 = vmax.f32 %v636, 1.0
          %v653 = vmax.f32 %v637, 1.0
          %v654 = vmax.f32 %v638, 1.0
          %v655 = vmax.f32 %v639, 1.0
          %v656 = vmax.f32 %v640, 1.0
          %v657 = vmax.f32 %v641, 1.0
          %v658 = vmax.f32 %v642, 1.0
          %v659 = vmax.f32 %v643, 1.0
          %v660 = vmax.f32 %v644, 1.0
          %v661 = vmax.f32 %v645, 1.0
          %v662 = vmax.f32 %v646, 1.0
          %v663 = vmax.f32 %v647, 1.0
          %v664 = vmax.f32 %v648, 1.0
          %v665 = vmax.f32 %v649, 1.0
          %v666 = vrcp.pop %v650
          %v667 = vrcp.pop %v651
          %v668 = vrcp.pop %v652
          %v669 = vrcp.pop %v653
          %v670 = vrcp.pop %v654
          %v671 = vrcp.pop %v655
          %v672 = vrcp.pop %v656
          %v673 = vrcp.pop %v657
          %v674 = vrcp.pop %v658
          %v675 = vrcp.pop %v659
          %v676 = vrcp.pop %v660
          %v677 = vrcp.pop %v661
          %v678 = vrcp.pop %v662
          %v679 = vrcp.pop %v663
          %v680 = vrcp.pop %v664
          %v681 = vrcp.pop %v665
          %683 = vset.pattern.permute.xlu0 16
          %684 = vperm.xlu0 %683, %v666
          %v685 = vpop.permute.xlu0 %684
          %688 = vset.pattern.permute.xlu0 16
          %689 = vperm.xlu0 %688, %v667
          %v690 = vpop.permute.xlu0 %689
          %693 = vset.pattern.permute.xlu0 16
          %694 = vperm.xlu0 %693, %v668
          %v695 = vpop.permute.xlu0 %694
          %698 = vset.pattern.permute.xlu0 16
          %699 = vperm.xlu0 %698, %v669
          %v700 = vpop.permute.xlu0 %699
          %703 = vset.pattern.permute.xlu0 16
          %704 = vperm.xlu0 %703, %v670
          %v705 = vpop.permute.xlu0 %704
          %708 = vset.pattern.permute.xlu0 16
          %709 = vperm.xlu0 %708, %v671
          %v710 = vpop.permute.xlu0 %709
          %713 = vset.pattern.permute.xlu0 16
          %714 = vperm.xlu0 %713, %v672
          %v715 = vpop.permute.xlu0 %714
          %718 = vset.pattern.permute.xlu0 16
          %719 = vperm.xlu0 %718, %v673
          %v720 = vpop.permute.xlu0 %719
          %723 = vset.pattern.permute.xlu0 16
          %724 = vperm.xlu0 %723, %v674
          %v725 = vpop.permute.xlu0 %724
          %728 = vset.pattern.permute.xlu0 16
          %729 = vperm.xlu0 %728, %v675
          %v730 = vpop.permute.xlu0 %729
          %733 = vset.pattern.permute.xlu0 16
          %734 = vperm.xlu0 %733, %v676
          %v735 = vpop.permute.xlu0 %734
          %738 = vset.pattern.permute.xlu0 16
          %739 = vperm.xlu0 %738, %v677
          %v740 = vpop.permute.xlu0 %739
          %743 = vset.pattern.permute.xlu0 16
          %744 = vperm.xlu0 %743, %v678
          %v745 = vpop.permute.xlu0 %744
          %748 = vset.pattern.permute.xlu0 16
          %749 = vperm.xlu0 %748, %v679
          %v750 = vpop.permute.xlu0 %749
          %753 = vset.pattern.permute.xlu0 16
          %754 = vperm.xlu0 %753, %v680
          %v755 = vpop.permute.xlu0 %754
          %758 = vset.pattern.permute.xlu0 16
          %759 = vperm.xlu0 %758, %v681
          %v760 = vpop.permute.xlu0 %759
          %v762 = vmul.f32 %v634, %v685
          %v763 = vmul.f32 %v635, %v690
          %v764 = vmul.f32 %v636, %v695
          %v765 = vmul.f32 %v637, %v700
          %v766 = vmul.f32 %v638, %v705
          %v767 = vmul.f32 %v639, %v710
          %v768 = vmul.f32 %v640, %v715
          %v769 = vmul.f32 %v641, %v720
          %v770 = vmul.f32 %v642, %v725
          %v771 = vmul.f32 %v643, %v730
          %v772 = vmul.f32 %v644, %v735
          %v773 = vmul.f32 %v645, %v740
          %v774 = vmul.f32 %v646, %v745
          %v775 = vmul.f32 %v647, %v750
          %v776 = vmul.f32 %v648, %v755
          %v777 = vmul.f32 %v649, %v760
          %v778 = vpack.c.bf16 %v763, %v762
          %v779 = vpack.c.bf16 %v765, %v764
          %v780 = vpack.c.bf16 %v767, %v766
          %v781 = vpack.c.bf16 %v769, %v768
          %v782 = vpack.c.bf16 %v771, %v770
          %v783 = vpack.c.bf16 %v773, %v772
          %v784 = vpack.c.bf16 %v775, %v774
          %v785 = vpack.c.bf16 %v777, %v776
          %v786 = vld [vmem:[%s332] sm:$0xf]
          %v787 = vld [vmem:[%s332 + $0x4] sm:$0xf]
          %v788 = vld [vmem:[%s332 + $0x8] sm:$0xf]
          %v789 = vld [vmem:[%s332 + $0xc] sm:$0xf]
          %v790 = vld [vmem:[%s332 + $0x10] sm:$0xf]
          %v791 = vld [vmem:[%s332 + $0x14] sm:$0xf]
          %v792 = vld [vmem:[%s332 + $0x18] sm:$0xf]
          %v793 = vld [vmem:[%s332 + $0x1c] sm:$0xf]
          %v794 = vld [vmem:[%s332 + $0x20] sm:$0xf]
          %v795 = vld [vmem:[%s332 + $0x24] sm:$0xf]
          %v796 = vld [vmem:[%s332 + $0x28] sm:$0xf]
          %v797 = vld [vmem:[%s332 + $0x2c] sm:$0xf]
          %v798 = vld [vmem:[%s332 + $0x30] sm:$0xf]
          %v799 = vld [vmem:[%s332 + $0x34] sm:$0xf]
          %v800 = vld [vmem:[%s332 + $0x38] sm:$0xf]
          %v801 = vld [vmem:[%s332 + $0x3c] sm:$0xf]
          %v802 = vld [vmem:[#allocation9] sm:$0xf]
          %v803 = vld [vmem:[#allocation9 + $0x4] sm:$0xf]
          %v804 = vld [vmem:[#allocation9 + $0x8] sm:$0xf]
          %v805 = vld [vmem:[#allocation9 + $0xc] sm:$0xf]
          %v806 = vld [vmem:[#allocation9 + $0x10] sm:$0xf]
          %v807 = vld [vmem:[#allocation9 + $0x14] sm:$0xf]
          %v808 = vld [vmem:[#allocation9 + $0x18] sm:$0xf]
          %v809 = vld [vmem:[#allocation9 + $0x1c] sm:$0xf]
          %v810 = vld [vmem:[#allocation9 + $0x20] sm:$0xf]
          %v811 = vld [vmem:[#allocation9 + $0x24] sm:$0xf]
          %v812 = vld [vmem:[#allocation9 + $0x28] sm:$0xf]
          %v813 = vld [vmem:[#allocation9 + $0x2c] sm:$0xf]
          %v814 = vld [vmem:[#allocation9 + $0x30] sm:$0xf]
          %v815 = vld [vmem:[#allocation9 + $0x34] sm:$0xf]
          %v816 = vld [vmem:[#allocation9 + $0x38] sm:$0xf]
          %v817 = vld [vmem:[#allocation9 + $0x3c] sm:$0xf]
          %v818 = vld [vmem:[#allocation10] sm:$0xf]
          %v819 = vld [vmem:[#allocation10 + $0x4] sm:$0xf]
          %v820 = vld [vmem:[#allocation10 + $0x8] sm:$0xf]
          %v821 = vld [vmem:[#allocation10 + $0xc] sm:$0xf]
          %v822 = vld [vmem:[#allocation10 + $0x10] sm:$0xf]
          %v823 = vld [vmem:[#allocation10 + $0x14] sm:$0xf]
          %v824 = vld [vmem:[#allocation10 + $0x18] sm:$0xf]
          %v825 = vld [vmem:[#allocation10 + $0x1c] sm:$0xf]
          %v826 = vld [vmem:[#allocation10 + $0x20] sm:$0xf]
          %v827 = vld [vmem:[#allocation10 + $0x24] sm:$0xf]
          %v828 = vld [vmem:[#allocation10 + $0x28] sm:$0xf]
          %v829 = vld [vmem:[#allocation10 + $0x2c] sm:$0xf]
          %v830 = vld [vmem:[#allocation10 + $0x30] sm:$0xf]
          %v831 = vld [vmem:[#allocation10 + $0x34] sm:$0xf]
          %v832 = vld [vmem:[#allocation10 + $0x38] sm:$0xf]
          %v833 = vld [vmem:[#allocation10 + $0x3c] sm:$0xf]
          %v850 = vunpack.c.l.b16 %v818
          %v851 = vunpack.c.l.b16 %v819
          %v852 = vunpack.c.l.b16 %v820
          %v853 = vunpack.c.l.b16 %v821
          %v854 = vunpack.c.l.b16 %v822
          %v855 = vunpack.c.l.b16 %v823
          %v856 = vunpack.c.l.b16 %v824
          %v857 = vunpack.c.l.b16 %v825
          %v858 = vunpack.c.l.b16 %v826
          %v859 = vunpack.c.l.b16 %v827
          %v860 = vunpack.c.l.b16 %v828
          %v861 = vunpack.c.l.b16 %v829
          %v862 = vunpack.c.l.b16 %v830
          %v863 = vunpack.c.l.b16 %v831
          %v864 = vunpack.c.l.b16 %v832
          %v865 = vunpack.c.l.b16 %v833
          %v866 = vpack.c.b16 %v851, %v850
          %v867 = vpack.c.b16 %v853, %v852
          %v868 = vpack.c.b16 %v855, %v854
          %v869 = vpack.c.b16 %v857, %v856
          %v870 = vpack.c.b16 %v859, %v858
          %v871 = vpack.c.b16 %v861, %v860
          %v872 = vpack.c.b16 %v863, %v862
          %v873 = vpack.c.b16 %v865, %v864
          %882 = vmatpush.bf16.msra.mxu0 %v873
          %883 = vmatpush.bf16.msra.mxu0 %v872
          %884 = vmatpush.bf16.msra.mxu0 %v871
          %885 = vmatpush.bf16.msra.mxu0 %v870
          %886 = vmatpush.bf16.msra.mxu0 %v869
          %887 = vmatpush.bf16.msra.mxu0 %v868
          %888 = vmatpush.bf16.msra.mxu0 %v867
          %889 = vmatpush.bf16.msra.mxu0 %v866
          %890 = vmatmul.bf16.gmra.mxu0 %v778
          %v891 = vpop.f32.mrf.mxu0
          %v892 = vadd.f32 0.0, %v891
          %v893 = vpop.f32.mrf.mxu0
          %v894 = vadd.f32 0.0, %v893
          %895 = vmatmul.bf16.gmra.mxu0 %v779
          %v896 = vpop.f32.mrf.mxu0
          %v897 = vadd.f32 0.0, %v896
          %v898 = vpop.f32.mrf.mxu0
          %v899 = vadd.f32 0.0, %v898
          %900 = vmatmul.bf16.gmra.mxu0 %v780
          %v901 = vpop.f32.mrf.mxu0
          %v902 = vadd.f32 0.0, %v901
          %v903 = vpop.f32.mrf.mxu0
          %v904 = vadd.f32 0.0, %v903
          %905 = vmatmul.bf16.gmra.mxu0 %v781
          %v906 = vpop.f32.mrf.mxu0
          %v907 = vadd.f32 0.0, %v906
          %v908 = vpop.f32.mrf.mxu0
          %v909 = vadd.f32 0.0, %v908
          %910 = vmatmul.bf16.gmra.mxu0 %v782
          %v911 = vpop.f32.mrf.mxu0
          %v912 = vadd.f32 0.0, %v911
          %v913 = vpop.f32.mrf.mxu0
          %v914 = vadd.f32 0.0, %v913
          %915 = vmatmul.bf16.gmra.mxu0 %v783
          %v916 = vpop.f32.mrf.mxu0
          %v917 = vadd.f32 0.0, %v916
          %v918 = vpop.f32.mrf.mxu0
          %v919 = vadd.f32 0.0, %v918
          %920 = vmatmul.bf16.gmra.mxu0 %v784
          %v921 = vpop.f32.mrf.mxu0
          %v922 = vadd.f32 0.0, %v921
          %v923 = vpop.f32.mrf.mxu0
          %v924 = vadd.f32 0.0, %v923
          %925 = vmatmul.bf16.gmra.mxu0 %v785
          %v926 = vpop.f32.mrf.mxu0
          %v927 = vadd.f32 0.0, %v926
          %v928 = vpop.f32.mrf.mxu0
          %v929 = vadd.f32 0.0, %v928
          %930 = vdwg.mxu0
          %v947 = vunpack.c.l.b16 %v786
          %v948 = vunpack.c.l.b16 %v787
          %v949 = vunpack.c.l.b16 %v788
          %v950 = vunpack.c.l.b16 %v789
          %v951 = vunpack.c.l.b16 %v790
          %v952 = vunpack.c.l.b16 %v791
          %v953 = vunpack.c.l.b16 %v792
          %v954 = vunpack.c.l.b16 %v793
          %v955 = vunpack.c.l.b16 %v794
          %v956 = vunpack.c.l.b16 %v795
          %v957 = vunpack.c.l.b16 %v796
          %v958 = vunpack.c.l.b16 %v797
          %v959 = vunpack.c.l.b16 %v798
          %v960 = vunpack.c.l.b16 %v799
          %v961 = vunpack.c.l.b16 %v800
          %v962 = vunpack.c.l.b16 %v801
          %v963 = vpack.c.b16 %v948, %v947
          %v964 = vpack.c.b16 %v950, %v949
          %v965 = vpack.c.b16 %v952, %v951
          %v966 = vpack.c.b16 %v954, %v953
          %v967 = vpack.c.b16 %v956, %v955
          %v968 = vpack.c.b16 %v958, %v957
          %v969 = vpack.c.b16 %v960, %v959
          %v970 = vpack.c.b16 %v962, %v961
          %v995 = vunpack.c.l.b16 %v802
          %v996 = vunpack.c.l.b16 %v803
          %v997 = vunpack.c.l.b16 %v804
          %v998 = vunpack.c.l.b16 %v805
          %v999 = vunpack.c.l.b16 %v806
          %v1000 = vunpack.c.l.b16 %v807
          %v1001 = vunpack.c.l.b16 %v808
          %v1002 = vunpack.c.l.b16 %v809
          %v1003 = vunpack.c.l.b16 %v810
          %v1004 = vunpack.c.l.b16 %v811
          %v1005 = vunpack.c.l.b16 %v812
          %v1006 = vunpack.c.l.b16 %v813
          %v1007 = vunpack.c.l.b16 %v814
          %v1008 = vunpack.c.l.b16 %v815
          %v1009 = vunpack.c.l.b16 %v816
          %v1010 = vunpack.c.l.b16 %v817
          %v1011 = vpack.c.b16 %v996, %v995
          %v1012 = vpack.c.b16 %v998, %v997
          %v1013 = vpack.c.b16 %v1000, %v999
          %v1014 = vpack.c.b16 %v1002, %v1001
          %v1015 = vpack.c.b16 %v1004, %v1003
          %v1016 = vpack.c.b16 %v1006, %v1005
          %v1017 = vpack.c.b16 %v1008, %v1007
          %v1018 = vpack.c.b16 %v1010, %v1009
          %1027 = vmatpush.bf16.msra.mxu0 %v1018
          %1028 = vmatpush.bf16.msra.mxu0 %v1017
          %1029 = vmatpush.bf16.msra.mxu0 %v1016
          %1030 = vmatpush.bf16.msra.mxu0 %v1015
          %1031 = vmatpush.bf16.msra.mxu0 %v1014
          %1032 = vmatpush.bf16.msra.mxu0 %v1013
          %1033 = vmatpush.bf16.msra.mxu0 %v1012
          %1034 = vmatpush.bf16.msra.mxu0 %v1011
          %1035 = vmatmul.bf16.gmra.mxu0 %v963
          %v1036 = vpop.f32.mrf.mxu0
          %v1037 = vadd.f32 %v892, %v1036
          %v1038 = vpop.f32.mrf.mxu0
          %v1039 = vadd.f32 %v894, %v1038
          %1040 = vmatmul.bf16.gmra.mxu0 %v964
          %v1041 = vpop.f32.mrf.mxu0
          %v1042 = vadd.f32 %v897, %v1041
          %v1043 = vpop.f32.mrf.mxu0
          %v1044 = vadd.f32 %v899, %v1043
          %1045 = vmatmul.bf16.gmra.mxu0 %v965
          %v1046 = vpop.f32.mrf.mxu0
          %v1047 = vadd.f32 %v902, %v1046
          %v1048 = vpop.f32.mrf.mxu0
          %v1049 = vadd.f32 %v904, %v1048
          %1050 = vmatmul.bf16.gmra.mxu0 %v966
          %v1051 = vpop.f32.mrf.mxu0
          %v1052 = vadd.f32 %v907, %v1051
          %v1053 = vpop.f32.mrf.mxu0
          %v1054 = vadd.f32 %v909, %v1053
          %1055 = vmatmul.bf16.gmra.mxu0 %v967
          %v1056 = vpop.f32.mrf.mxu0
          %v1057 = vadd.f32 %v912, %v1056
          %v1058 = vpop.f32.mrf.mxu0
          %v1059 = vadd.f32 %v914, %v1058
          %1060 = vmatmul.bf16.gmra.mxu0 %v968
          %v1061 = vpop.f32.mrf.mxu0
          %v1062 = vadd.f32 %v917, %v1061
          %v1063 = vpop.f32.mrf.mxu0
          %v1064 = vadd.f32 %v919, %v1063
          %1065 = vmatmul.bf16.gmra.mxu0 %v969
          %v1066 = vpop.f32.mrf.mxu0
          %v1067 = vadd.f32 %v922, %v1066
          %v1068 = vpop.f32.mrf.mxu0
          %v1069 = vadd.f32 %v924, %v1068
          %1070 = vmatmul.bf16.gmra.mxu0 %v970
          %v1071 = vpop.f32.mrf.mxu0
          %v1072 = vadd.f32 %v927, %v1071
          %v1073 = vpop.f32.mrf.mxu0
          %v1074 = vadd.f32 %v929, %v1073
          %1075 = vdwg.mxu0
          %v1076 = vld [vmem:[%s5] sm:$0x1]
          %v1078 = vperm.slane %v1076, 0
          %v1080 = vadd.f32 %v1037, %v1078
          %v1081 = vadd.f32 %v1039, %v1078
          %v1082 = vadd.f32 %v1042, %v1078
          %v1083 = vadd.f32 %v1044, %v1078
          %v1084 = vadd.f32 %v1047, %v1078
          %v1085 = vadd.f32 %v1049, %v1078
          %v1086 = vadd.f32 %v1052, %v1078
          %v1087 = vadd.f32 %v1054, %v1078
          %v1088 = vadd.f32 %v1057, %v1078
          %v1089 = vadd.f32 %v1059, %v1078
          %v1090 = vadd.f32 %v1062, %v1078
          %v1091 = vadd.f32 %v1064, %v1078
          %v1092 = vadd.f32 %v1067, %v1078
          %v1093 = vadd.f32 %v1069, %v1078
          %v1094 = vadd.f32 %v1072, %v1078
          %v1095 = vadd.f32 %v1074, %v1078
          %v1096 = vmax.f32 %v1080, 0.0
          %v1097 = vmax.f32 %v1081, 0.0
          %v1098 = vmax.f32 %v1082, 0.0
          %v1099 = vmax.f32 %v1083, 0.0
          %v1100 = vmax.f32 %v1084, 0.0
          %v1101 = vmax.f32 %v1085, 0.0
          %v1102 = vmax.f32 %v1086, 0.0
          %v1103 = vmax.f32 %v1087, 0.0
          %v1104 = vmax.f32 %v1088, 0.0
          %v1105 = vmax.f32 %v1089, 0.0
          %v1106 = vmax.f32 %v1090, 0.0
          %v1107 = vmax.f32 %v1091, 0.0
          %v1108 = vmax.f32 %v1092, 0.0
          %v1109 = vmax.f32 %v1093, 0.0
          %v1110 = vmax.f32 %v1094, 0.0
          %v1111 = vmax.f32 %v1095, 0.0
          %v1112 = vmul.f32 %v1096, %v1096
          %v1113 = vmul.f32 %v1097, %v1097
          %v1114 = vmul.f32 %v1098, %v1098
          %v1115 = vmul.f32 %v1099, %v1099
          %v1116 = vmul.f32 %v1100, %v1100
          %v1117 = vmul.f32 %v1101, %v1101
          %v1118 = vmul.f32 %v1102, %v1102
          %v1119 = vmul.f32 %v1103, %v1103
          %v1120 = vmul.f32 %v1104, %v1104
          %v1121 = vmul.f32 %v1105, %v1105
          %v1122 = vmul.f32 %v1106, %v1106
          %v1123 = vmul.f32 %v1107, %v1107
          %v1124 = vmul.f32 %v1108, %v1108
          %v1125 = vmul.f32 %v1109, %v1109
          %v1126 = vmul.f32 %v1110, %v1110
          %v1127 = vmul.f32 %v1111, %v1111
          %1128 = vadd.xlane.f32.xlu0 %v1112
          %v1129 = vpop.xlane.xlu0 %1128
          %1130 = vadd.xlane.f32.xlu0 %v1113
          %v1131 = vpop.xlane.xlu0 %1130
          %1132 = vadd.xlane.f32.xlu0 %v1114
          %v1133 = vpop.xlane.xlu0 %1132
          %1134 = vadd.xlane.f32.xlu0 %v1115
          %v1135 = vpop.xlane.xlu0 %1134
          %1136 = vadd.xlane.f32.xlu0 %v1116
          %v1137 = vpop.xlane.xlu0 %1136
          %1138 = vadd.xlane.f32.xlu0 %v1117
          %v1139 = vpop.xlane.xlu0 %1138
          %1140 = vadd.xlane.f32.xlu0 %v1118
          %v1141 = vpop.xlane.xlu0 %1140
          %1142 = vadd.xlane.f32.xlu0 %v1119
          %v1143 = vpop.xlane.xlu0 %1142
          %1144 = vadd.xlane.f32.xlu0 %v1120
          %v1145 = vpop.xlane.xlu0 %1144
          %1146 = vadd.xlane.f32.xlu0 %v1121
          %v1147 = vpop.xlane.xlu0 %1146
          %1148 = vadd.xlane.f32.xlu0 %v1122
          %v1149 = vpop.xlane.xlu0 %1148
          %1150 = vadd.xlane.f32.xlu0 %v1123
          %v1151 = vpop.xlane.xlu0 %1150
          %1152 = vadd.xlane.f32.xlu0 %v1124
          %v1153 = vpop.xlane.xlu0 %1152
          %1154 = vadd.xlane.f32.xlu0 %v1125
          %v1155 = vpop.xlane.xlu0 %1154
          %1156 = vadd.xlane.f32.xlu0 %v1126
          %v1157 = vpop.xlane.xlu0 %1156
          %1158 = vadd.xlane.f32.xlu0 %v1127
          %v1159 = vpop.xlane.xlu0 %1158
          %v1160 = vmax.f32 %v1129, 1e-24
          %v1161 = vmax.f32 %v1131, 1e-24
          %v1162 = vmax.f32 %v1133, 1e-24
          %v1163 = vmax.f32 %v1135, 1e-24
          %v1164 = vmax.f32 %v1137, 1e-24
          %v1165 = vmax.f32 %v1139, 1e-24
          %v1166 = vmax.f32 %v1141, 1e-24
          %v1167 = vmax.f32 %v1143, 1e-24
          %v1168 = vmax.f32 %v1145, 1e-24
          %v1169 = vmax.f32 %v1147, 1e-24
          %v1170 = vmax.f32 %v1149, 1e-24
          %v1171 = vmax.f32 %v1151, 1e-24
          %v1172 = vmax.f32 %v1153, 1e-24
          %v1173 = vmax.f32 %v1155, 1e-24
          %v1174 = vmax.f32 %v1157, 1e-24
          %v1175 = vmax.f32 %v1159, 1e-24
          %v1176 = vrsqrt.pop %v1160
          %v1177 = vmul.f32 %v1176, %v1160
          %v1178 = vmul.f32 %v1177, %v1176
          %v1179 = vmul.f32 0.5, %v1178
          %v1180 = vsub.f32 1.5, %v1179
          %v1181 = vmul.f32 %v1176, %v1180
          %vm1182 = vweird.f32 %v1160
          %vm1183 = vweird.f32 %v1176
          %vm1184 = vmor %vm1182, %vm1183
          %v1185 = vsel %vm1184, %v1176, %v1181
          %v1186 = vrsqrt.pop %v1161
          %v1187 = vmul.f32 %v1186, %v1161
          %v1188 = vmul.f32 %v1187, %v1186
          %v1189 = vmul.f32 0.5, %v1188
          %v1190 = vsub.f32 1.5, %v1189
          %v1191 = vmul.f32 %v1186, %v1190
          %vm1192 = vweird.f32 %v1161
          %vm1193 = vweird.f32 %v1186
          %vm1194 = vmor %vm1192, %vm1193
          %v1195 = vsel %vm1194, %v1186, %v1191
          %v1196 = vrsqrt.pop %v1162
          %v1197 = vmul.f32 %v1196, %v1162
          %v1198 = vmul.f32 %v1197, %v1196
          %v1199 = vmul.f32 0.5, %v1198
          %v1200 = vsub.f32 1.5, %v1199
          %v1201 = vmul.f32 %v1196, %v1200
          %vm1202 = vweird.f32 %v1162
          %vm1203 = vweird.f32 %v1196
          %vm1204 = vmor %vm1202, %vm1203
          %v1205 = vsel %vm1204, %v1196, %v1201
          %v1206 = vrsqrt.pop %v1163
          %v1207 = vmul.f32 %v1206, %v1163
          %v1208 = vmul.f32 %v1207, %v1206
          %v1209 = vmul.f32 0.5, %v1208
          %v1210 = vsub.f32 1.5, %v1209
          %v1211 = vmul.f32 %v1206, %v1210
          %vm1212 = vweird.f32 %v1163
          %vm1213 = vweird.f32 %v1206
          %vm1214 = vmor %vm1212, %vm1213
          %v1215 = vsel %vm1214, %v1206, %v1211
          %v1216 = vrsqrt.pop %v1164
          %v1217 = vmul.f32 %v1216, %v1164
          %v1218 = vmul.f32 %v1217, %v1216
          %v1219 = vmul.f32 0.5, %v1218
          %v1220 = vsub.f32 1.5, %v1219
          %v1221 = vmul.f32 %v1216, %v1220
          %vm1222 = vweird.f32 %v1164
          %vm1223 = vweird.f32 %v1216
          %vm1224 = vmor %vm1222, %vm1223
          %v1225 = vsel %vm1224, %v1216, %v1221
          %v1226 = vrsqrt.pop %v1165
          %v1227 = vmul.f32 %v1226, %v1165
          %v1228 = vmul.f32 %v1227, %v1226
          %v1229 = vmul.f32 0.5, %v1228
          %v1230 = vsub.f32 1.5, %v1229
          %v1231 = vmul.f32 %v1226, %v1230
          %vm1232 = vweird.f32 %v1165
          %vm1233 = vweird.f32 %v1226
          %vm1234 = vmor %vm1232, %vm1233
          %v1235 = vsel %vm1234, %v1226, %v1231
          %v1236 = vrsqrt.pop %v1166
          %v1237 = vmul.f32 %v1236, %v1166
          %v1238 = vmul.f32 %v1237, %v1236
          %v1239 = vmul.f32 0.5, %v1238
          %v1240 = vsub.f32 1.5, %v1239
          %v1241 = vmul.f32 %v1236, %v1240
          %vm1242 = vweird.f32 %v1166
          %vm1243 = vweird.f32 %v1236
          %vm1244 = vmor %vm1242, %vm1243
          %v1245 = vsel %vm1244, %v1236, %v1241
          %v1246 = vrsqrt.pop %v1167
          %v1247 = vmul.f32 %v1246, %v1167
          %v1248 = vmul.f32 %v1247, %v1246
          %v1249 = vmul.f32 0.5, %v1248
          %v1250 = vsub.f32 1.5, %v1249
          %v1251 = vmul.f32 %v1246, %v1250
          %vm1252 = vweird.f32 %v1167
          %vm1253 = vweird.f32 %v1246
          %vm1254 = vmor %vm1252, %vm1253
          %v1255 = vsel %vm1254, %v1246, %v1251
          %v1256 = vrsqrt.pop %v1168
          %v1257 = vmul.f32 %v1256, %v1168
          %v1258 = vmul.f32 %v1257, %v1256
          %v1259 = vmul.f32 0.5, %v1258
          %v1260 = vsub.f32 1.5, %v1259
          %v1261 = vmul.f32 %v1256, %v1260
          %vm1262 = vweird.f32 %v1168
          %vm1263 = vweird.f32 %v1256
          %vm1264 = vmor %vm1262, %vm1263
          %v1265 = vsel %vm1264, %v1256, %v1261
          %v1266 = vrsqrt.pop %v1169
          %v1267 = vmul.f32 %v1266, %v1169
          %v1268 = vmul.f32 %v1267, %v1266
          %v1269 = vmul.f32 0.5, %v1268
          %v1270 = vsub.f32 1.5, %v1269
          %v1271 = vmul.f32 %v1266, %v1270
          %vm1272 = vweird.f32 %v1169
          %vm1273 = vweird.f32 %v1266
          %vm1274 = vmor %vm1272, %vm1273
          %v1275 = vsel %vm1274, %v1266, %v1271
          %v1276 = vrsqrt.pop %v1170
          %v1277 = vmul.f32 %v1276, %v1170
          %v1278 = vmul.f32 %v1277, %v1276
          %v1279 = vmul.f32 0.5, %v1278
          %v1280 = vsub.f32 1.5, %v1279
          %v1281 = vmul.f32 %v1276, %v1280
          %vm1282 = vweird.f32 %v1170
          %vm1283 = vweird.f32 %v1276
          %vm1284 = vmor %vm1282, %vm1283
          %v1285 = vsel %vm1284, %v1276, %v1281
          %v1286 = vrsqrt.pop %v1171
          %v1287 = vmul.f32 %v1286, %v1171
          %v1288 = vmul.f32 %v1287, %v1286
          %v1289 = vmul.f32 0.5, %v1288
          %v1290 = vsub.f32 1.5, %v1289
          %v1291 = vmul.f32 %v1286, %v1290
          %vm1292 = vweird.f32 %v1171
          %vm1293 = vweird.f32 %v1286
          %vm1294 = vmor %vm1292, %vm1293
          %v1295 = vsel %vm1294, %v1286, %v1291
          %v1296 = vrsqrt.pop %v1172
          %v1297 = vmul.f32 %v1296, %v1172
          %v1298 = vmul.f32 %v1297, %v1296
          %v1299 = vmul.f32 0.5, %v1298
          %v1300 = vsub.f32 1.5, %v1299
          %v1301 = vmul.f32 %v1296, %v1300
          %vm1302 = vweird.f32 %v1172
          %vm1303 = vweird.f32 %v1296
          %vm1304 = vmor %vm1302, %vm1303
          %v1305 = vsel %vm1304, %v1296, %v1301
          %v1306 = vrsqrt.pop %v1173
          %v1307 = vmul.f32 %v1306, %v1173
          %v1308 = vmul.f32 %v1307, %v1306
          %v1309 = vmul.f32 0.5, %v1308
          %v1310 = vsub.f32 1.5, %v1309
          %v1311 = vmul.f32 %v1306, %v1310
          %vm1312 = vweird.f32 %v1173
          %vm1313 = vweird.f32 %v1306
          %vm1314 = vmor %vm1312, %vm1313
          %v1315 = vsel %vm1314, %v1306, %v1311
          %v1316 = vrsqrt.pop %v1174
          %v1317 = vmul.f32 %v1316, %v1174
          %v1318 = vmul.f32 %v1317, %v1316
          %v1319 = vmul.f32 0.5, %v1318
          %v1320 = vsub.f32 1.5, %v1319
          %v1321 = vmul.f32 %v1316, %v1320
          %vm1322 = vweird.f32 %v1174
          %vm1323 = vweird.f32 %v1316
          %vm1324 = vmor %vm1322, %vm1323
          %v1325 = vsel %vm1324, %v1316, %v1321
          %v1326 = vrsqrt.pop %v1175
          %v1327 = vmul.f32 %v1326, %v1175
          %v1328 = vmul.f32 %v1327, %v1326
          %v1329 = vmul.f32 0.5, %v1328
          %v1330 = vsub.f32 1.5, %v1329
          %v1331 = vmul.f32 %v1326, %v1330
          %vm1332 = vweird.f32 %v1175
          %vm1333 = vweird.f32 %v1326
          %vm1334 = vmor %vm1332, %vm1333
          %v1335 = vsel %vm1334, %v1326, %v1331
          %v1336 = vmul.f32 %v1096, %v1185
          %v1337 = vmul.f32 %v1097, %v1195
          %v1338 = vmul.f32 %v1098, %v1205
          %v1339 = vmul.f32 %v1099, %v1215
          %v1340 = vmul.f32 %v1100, %v1225
          %v1341 = vmul.f32 %v1101, %v1235
          %v1342 = vmul.f32 %v1102, %v1245
          %v1343 = vmul.f32 %v1103, %v1255
          %v1344 = vmul.f32 %v1104, %v1265
          %v1345 = vmul.f32 %v1105, %v1275
          %v1346 = vmul.f32 %v1106, %v1285
          %v1347 = vmul.f32 %v1107, %v1295
          %v1348 = vmul.f32 %v1108, %v1305
          %v1349 = vmul.f32 %v1109, %v1315
          %v1350 = vmul.f32 %v1110, %v1325
          %v1351 = vmul.f32 %v1111, %v1335
          %v1352 = vlaneseq
          %v1353 = vand.u32 %v1352, 127
          %vm1354 = vcmp.eq.s32.totalorder %v1353, 32
          %v1355 = vsel %vm1354, 1.0, %v1336
          %v1356 = vsel %vm1354, 1.0, %v1337
          %v1357 = vsel %vm1354, 1.0, %v1338
          %v1358 = vsel %vm1354, 1.0, %v1339
          %v1359 = vsel %vm1354, 1.0, %v1340
          %v1360 = vsel %vm1354, 1.0, %v1341
          %v1361 = vsel %vm1354, 1.0, %v1342
          %v1362 = vsel %vm1354, 1.0, %v1343
          %v1363 = vsel %vm1354, 1.0, %v1344
          %v1364 = vsel %vm1354, 1.0, %v1345
          %v1365 = vsel %vm1354, 1.0, %v1346
          %v1366 = vsel %vm1354, 1.0, %v1347
          %v1367 = vsel %vm1354, 1.0, %v1348
          %v1368 = vsel %vm1354, 1.0, %v1349
          %v1369 = vsel %vm1354, 1.0, %v1350
          %v1370 = vsel %vm1354, 1.0, %v1351
          %v1371 = vpack.c.bf16 %v1355, %v1355
          %v1372 = vpack.c.bf16 %v1356, %v1356
          %v1373 = vpack.c.bf16 %v1357, %v1357
          %v1374 = vpack.c.bf16 %v1358, %v1358
          %v1375 = vpack.c.bf16 %v1359, %v1359
          %v1376 = vpack.c.bf16 %v1360, %v1360
          %v1377 = vpack.c.bf16 %v1361, %v1361
          %v1378 = vpack.c.bf16 %v1362, %v1362
          %v1379 = vpack.c.bf16 %v1363, %v1363
          %v1380 = vpack.c.bf16 %v1364, %v1364
          %v1381 = vpack.c.bf16 %v1365, %v1365
          %v1382 = vpack.c.bf16 %v1366, %v1366
          %v1383 = vpack.c.bf16 %v1367, %v1367
          %v1384 = vpack.c.bf16 %v1368, %v1368
          %v1385 = vpack.c.bf16 %v1369, %v1369
          %v1386 = vpack.c.bf16 %v1370, %v1370
          %1387 = vst [vmem:[%s376] sm:$0xf] %v1371
          %1388 = vst [vmem:[%s376 + $0x4] sm:$0xf] %v1372
          %1389 = vst [vmem:[%s376 + $0x8] sm:$0xf] %v1373
          %1390 = vst [vmem:[%s376 + $0xc] sm:$0xf] %v1374
          %1391 = vst [vmem:[%s376 + $0x10] sm:$0xf] %v1375
          %1392 = vst [vmem:[%s376 + $0x14] sm:$0xf] %v1376
          %1393 = vst [vmem:[%s376 + $0x18] sm:$0xf] %v1377
          %1394 = vst [vmem:[%s376 + $0x1c] sm:$0xf] %v1378
          %1395 = vst [vmem:[%s376 + $0x20] sm:$0xf] %v1379
          %1396 = vst [vmem:[%s376 + $0x24] sm:$0xf] %v1380
          %1397 = vst [vmem:[%s376 + $0x28] sm:$0xf] %v1381
          %1398 = vst [vmem:[%s376 + $0x2c] sm:$0xf] %v1382
          %1399 = vst [vmem:[%s376 + $0x30] sm:$0xf] %v1383
          %1400 = vst [vmem:[%s376 + $0x34] sm:$0xf] %v1384
          %1401 = vst [vmem:[%s376 + $0x38] sm:$0xf] %v1385
          %1402 = vst [vmem:[%s376 + $0x3c] sm:$0xf] %v1386
        $region72: #{tpu_custom_call.1} parent=43 // pred_fallthru
          _
        %s1403 = sand.u32 %s183, 1
        %s1404 = scalar_lea.sflag [#allocation5], %s1403
        %s1405 = sand.u32 %s183, 1
        %s1406 = smul.addr %s1405, 64
        %s1407 = scalar_lea.vmem [#allocation12], %s1406
        // Predicated region
        $region73: #{tpu_custom_call.1} parent=43 // pred_check
          %p1408 = pneg %p193
        $region74: #{tpu_custom_call.1} parent=43 // pred_check_branch
          %1410 = sbr.rel (%p1408) target = $region76
        $region75: #{tpu_custom_call.1} parent=43 // pred_region
          %s1411 = smul.u32 16, %s29
          %1413 = vsyncadd %s1404, 0
          %s1414 = smul.addr %s1411, 4
          %s1415 = scalar_lea.hbm %s6, %s1414
          %s1416 = sshll.u32 %s1407, 4
          %s1417 = int_to_ptr.vmem [resolvable:$true] %s1416
          %s1418 = sshll.u32 %s1415, 4
          %s1419 = int_to_ptr.hbm [resolvable:$true] %s1418
          %1424 = dma.vmem_to_hbm [thread:$0]  %s1417, 1024, %s1419, %s1404, 64, 64, 4
        $region76: #{tpu_custom_call.1} parent=43 // pred_fallthru
          _
      $region44: #{tpu_custom_call.1} parent=5 // pred_fallthru
        _
      %p1425 = scmp.le.s32.totalorder 2, %s20
      // Predicated region
      $region77: #{tpu_custom_call.1} parent=5 // pred_check
        %p1426 = pneg %p1425
      $region78: #{tpu_custom_call.1} parent=5 // pred_check_branch
        %1428 = sbr.rel (%p1426) target = $region80
      $region79: #{tpu_custom_call.1} parent=5 // pred_region
        %s1429 = ssub.s32 %s20, 2
        // Predicated region
        $region81: #{tpu_custom_call.1} parent=79 // pred_check
          %p1430 = pneg %p199
        $region82: #{tpu_custom_call.1} parent=79 // pred_check_branch
          %1432 = sbr.rel (%p1430) target = $region84
        $region83: #{tpu_custom_call.1} parent=79 // pred_region
          %s1433 = sand.u32 %s184, 1
          %s1434 = scalar_lea.sflag [#allocation5], %s1433
          %s1435 = sand.u32 %s184, 1
          %s1436 = smul.addr %s1435, 64
          %s1437 = scalar_lea.vmem [#allocation12], %s1436
          %1439 = dma.done %s1434, 1024
        $region84: #{tpu_custom_call.1} parent=79 // pred_fallthru
          _
      $region80: #{tpu_custom_call.1} parent=5 // pred_fallthru
        _
    $region6: #{tpu_custom_call.1} parent=1 // loop_footer
      %s24 = sadd.s32 1, %s20
    $region7: #{tpu_custom_call.1} parent=1 // loop_footer_branch
      %19 = sbr.rel target = $region3
    $region8: #{tpu_custom_call.1} parent=1 // loop_exit
      _
    %1440 = vsyncpa [#allocation4], 1
    %s1441 = scalar_lea.sflag [#allocation4], 1
    %1442 = vsyncpa %s1441, 1
    %1443 = vsyncpa [#allocation7], 1
    %1444 = vsyncpa [#allocation11], 1
    %1445 = vsyncpa [#allocation5], 1
    %s1446 = scalar_lea.sflag [#allocation5], 1
    %1447 = vsyncpa %s1446, 1

</llo_original>
